<compile_context>
chip_gen: v7x
topology: tpu7x:2x2x1
jax: 0.10.0
libtpu: 0.0.40
codegen_flags: <defaults>
</compile_context>

<pallas_src>
import functools

import jax
import jax.numpy as jnp
from jax.experimental import pallas as pl
from jax.experimental.pallas import tpu as pltpu


def _make_dcnv2_kernel(n_extra_cross, out_dim):
    """Kernel factory; n_extra_cross / out_dim are static (trace-time) config."""
    mm = jnp.bfloat16

    def kernel(x_ref, wbig_ref, bbig_ref, *rest):
        if n_extra_cross > 0:
            wct_ref, bct_ref = rest[0], rest[1]
            rest = rest[2:]
        w2t_ref, b2_ref, wfx_ref, wfh_ref, bf_ref, out_ref = rest

        d = x_ref.shape[1]
        x_bf = x_ref[...].astype(mm)                                  # (TB, D)

        # Fused stage 0: one trans-B matmul (contract last dims) produces
        #   rows [0:D)      -> x0 feature-major (identity rows, zero bias)
        #   rows [D:2D)     -> cross-layer-0 pre-mix, bias already folds the "+ x0"
        #   rows [2D:2D+H1) -> DNN layer 1 pre-activation
        fused = jax.lax.dot_general(
            wbig_ref[...], x_bf, (((1,), (1,)), ((), ())),
            preferred_element_type=jnp.float32) + bbig_ref[...]       # (2D+H1, TB) f32
        x0 = fused[:d]                                                # (D, TB)
        x = x0 * fused[d:2 * d]                                       # cross layer 0 out
        h = jnp.maximum(fused[2 * d:], 0.0)                           # (H1, TB)

        # Remaining cross layers: x <- x0 * (W_l^T @ x + b_l) + x
        for l in range(n_extra_cross):
            xw = jnp.dot(wct_ref[l], x.astype(mm),
                         preferred_element_type=jnp.float32) + bct_ref[l]
            x = x0 * xw + x

        # DNN layer 2
        h = jnp.dot(w2t_ref[...], h.astype(mm),
                    preferred_element_type=jnp.float32) + b2_ref[...]
        h = jnp.maximum(h, 0.0)                                       # (H2, TB)

        # Final fc on concat([cross, dnn]) without materializing the concat.
        if out_dim == 1:
            out = (jnp.sum(x * wfx_ref[...], axis=0, keepdims=True)
                   + jnp.sum(h * wfh_ref[...], axis=0, keepdims=True)
                   + bf_ref[...])                                     # (1, TB) lane-dense
        else:
            out = (jax.lax.dot_general(wfx_ref[...].astype(mm), x.astype(mm),
                                       (((0,), (0,)), ((), ())),
                                       preferred_element_type=jnp.float32)
                   + jax.lax.dot_general(wfh_ref[...].astype(mm), h.astype(mm),
                                         (((0,), (0,)), ((), ())),
                                         preferred_element_type=jnp.float32)
                   + bf_ref[...])                                     # (O, TB)
        out_ref[...] = out.astype(out_ref.dtype)

    return kernel


def prepack_params(params):
    """One-time weight packing (hoisted out of the per-call forward)."""
    wc, bc = params["w_cross"], params["b_cross"]        # (L,D,D), (L,D)
    w1, b1 = params["w1"], params["b1"]                  # (D,H1), (H1,)
    w2, b2 = params["w2"], params["b2"]                  # (H1,H2), (H2,)
    wf, bf = params["w_fc"], params["b_fc"]              # (D+H2,O), (O,)
    L, D, _ = wc.shape
    H1, H2 = w1.shape[1], w2.shape[1]
    O = wf.shape[1]
    mm = jnp.bfloat16

    # Fused stage-0 weight: [I_D ; Wc0^T ; W1^T]  -> identity rows give x0 feature-major.
    wbig = jnp.concatenate(
        [jnp.eye(D, dtype=jnp.float32), wc[0].T, w1.T], axis=0).astype(mm)   # (2D+H1, D)
    bbig = jnp.concatenate(
        [jnp.zeros((D,), jnp.float32),
         bc[0].astype(jnp.float32) + 1.0,          # fold the "+ x0" of cross layer 0
         b1.astype(jnp.float32)], axis=0).reshape(2 * D + H1, 1)

    packed = {
        "wbig": wbig,
        "bbig": bbig,
        "wct": jnp.transpose(wc[1:], (0, 2, 1)).astype(mm) if L > 1 else None,
        "bct": bc[1:].reshape(L - 1, D, 1).astype(jnp.float32) if L > 1 else None,
        "w2t": w2.T.astype(mm),                                              # (H2, H1)
        "b2": b2.reshape(H2, 1).astype(jnp.float32),
        "wfx": wf[:D].astype(jnp.float32),                                   # (D, O)
        "wfh": wf[D:].astype(jnp.float32),                                   # (H2, O)
        "bf": bf.reshape(O, 1).astype(jnp.float32),
    }
    return packed


def _round_up(n, m):
    return ((n + m - 1) // m) * m


def dcnv2_forward(x, packed, *, tile_b=512):
    """DCNv2 forward. x: (B, D) float (bf16 preferred); packed from prepack_params."""
    B, D = x.shape
    wbig, bbig = packed["wbig"], packed["bbig"]
    wct, bct = packed["wct"], packed["bct"]
    w2t, b2 = packed["w2t"], packed["b2"]
    wfx, wfh, bfc = packed["wfx"], packed["wfh"], packed["bf"]
    O = bfc.shape[0]
    n_extra = 0 if wct is None else wct.shape[0]

    # Batch tile: multiple of 128 lanes, no larger than the rounded-up batch.
    tile_b = max(128, min(_round_up(tile_b, 128), _round_up(B, 128)))
    num_tiles = pl.cdiv(B, tile_b)
    Bp = num_tiles * tile_b
    xp = x if Bp == B else jnp.pad(x, ((0, Bp - B), (0, 0)))

    def const_spec(a):
        nd = a.ndim
        return pl.BlockSpec(a.shape, lambda i, _nd=nd: (0,) * _nd)

    in_specs = [pl.BlockSpec((tile_b, D), lambda i: (i, 0)),   # batch-major input tile
                const_spec(wbig), const_spec(bbig)]
    args = [xp, wbig, bbig]
    if n_extra > 0:
        in_specs += [const_spec(wct), const_spec(bct)]
        args += [wct, bct]
    in_specs += [const_spec(w2t), const_spec(b2),
                 const_spec(wfx), const_spec(wfh), const_spec(bfc)]
    args += [w2t, b2, wfx, wfh, bfc]

    out_t = pl.pallas_call(
        _make_dcnv2_kernel(n_extra, O),
        out_shape=jax.ShapeDtypeStruct((O, Bp), jnp.float32),
        grid_spec=pltpu.PrefetchScalarGridSpec(
            num_scalar_prefetch=0,
            grid=(num_tiles,),
            in_specs=in_specs,
            out_specs=pl.BlockSpec((O, tile_b), lambda i: (0, i)),
        ),
        compiler_params=pltpu.CompilerParams(
            dimension_semantics=("parallel",),
            vmem_limit_bytes=(64 << 20) if tile_b >= 4096 else None,
        ),
    )(*args)

    # Lane-dense (O, Bp) -> (B, O); output_dim == 1 is a pure reshape (no transpose pass).
    out = out_t.reshape(Bp, 1) if O == 1 else jnp.transpose(out_t)
    return out[:B] if Bp != B else out


def dcnv2_reference(x, params):
    """Pure-JAX reference with the module's (f32) semantics."""
    x0 = x.astype(jnp.float32)
    xl = x0
    for l in range(params["w_cross"].shape[0]):
        xl = x0 * (xl @ params["w_cross"][l] + params["b_cross"][l]) + xl
    h = jnp.maximum(x0 @ params["w1"] + params["b1"], 0.0)
    h = jnp.maximum(h @ params["w2"] + params["b2"], 0.0)
    final = jnp.concatenate([xl, h], axis=-1)
    return final @ params["w_fc"] + params["b_fc"]


def init_params(key, input_dim, num_cross_layers, hidden_dims, output_dim):
    keys = jax.random.split(key, 8)
    H1, H2 = hidden_dims
    scale = lambda fan_in: 1.0 / jnp.sqrt(jnp.float32(fan_in))
    return {
        "w_cross": jax.random.normal(keys[0], (num_cross_layers, input_dim, input_dim),
                                     jnp.float32) * scale(input_dim),
        "b_cross": jax.random.normal(keys[1], (num_cross_layers, input_dim),
                                     jnp.float32) * 0.01,
        "w1": jax.random.normal(keys[2], (input_dim, H1), jnp.float32) * scale(input_dim),
        "b1": jax.random.normal(keys[3], (H1,), jnp.float32) * 0.01,
        "w2": jax.random.normal(keys[4], (H1, H2), jnp.float32) * scale(H1),
        "b2": jax.random.normal(keys[5], (H2,), jnp.float32) * 0.01,
        "w_fc": jax.random.normal(keys[6], (input_dim + H2, output_dim),
                                  jnp.float32) * scale(input_dim + H2),
        "b_fc": jax.random.normal(keys[7], (output_dim,), jnp.float32) * 0.01,
    }


if __name__ == "__main__":
    BATCH = 4096            # tile_b=512 -> 8 grid steps (4 per v7x TensorCore)
    INPUT_DIM = 32          # features_config.num_final_features
    NUM_CROSS_LAYERS = 3
    HIDDEN_DIMS = (64, 32)  # parallel_hidden_dims
    OUTPUT_DIM = 1

    key = jax.random.PRNGKey(0)
    k_x, k_p = jax.random.split(key)
    # Producer ships features in bf16: halves DMA bytes of the only large streamed operand.
    x = jax.random.normal(k_x, (BATCH, INPUT_DIM), jnp.float32).astype(jnp.bfloat16)
    params = init_params(k_p, INPUT_DIM, NUM_CROSS_LAYERS, HIDDEN_DIMS, OUTPUT_DIM)

    packed = prepack_params(params)   # one-time weight packing, hoisted out of forward
    fwd = jax.jit(functools.partial(dcnv2_forward, packed=packed, tile_b=512))

    out = jax.block_until_ready(fwd(x))
    ref = dcnv2_reference(x, params)

    assert out.shape == (BATCH, OUTPUT_DIM)
    # bf16 matmul operands (f32 accumulation) are the only precision delta.
    err = float(jnp.max(jnp.abs(out - ref) / (1.0 + jnp.abs(ref))))
    assert err < 3e-2, f"mismatch vs reference: max normalized err {err}"

    # TODO(synk): categorical-feature embedding lookup (EmbeddingLayer with dict input)
    # is modeled as identity on an already-dense feature tensor.
    print("KERNEL_OK")
</pallas_src>

<mosaic_0001>
module attributes {stable_mosaic.version = 11 : i64} {
  func.func @kernel(%arg0: i32, %arg1: memref<512x32xbf16, #tpu.memory_space<vmem>>, %arg2: memref<128x32xbf16, #tpu.memory_space<vmem>>, %arg3: memref<128x1xf32, #tpu.memory_space<vmem>>, %arg4: memref<2x32x32xbf16, #tpu.memory_space<vmem>>, %arg5: memref<2x32x1xf32, #tpu.memory_space<vmem>>, %arg6: memref<32x64xbf16, #tpu.memory_space<vmem>>, %arg7: memref<32x1xf32, #tpu.memory_space<vmem>>, %arg8: memref<32x1xf32, #tpu.memory_space<vmem>>, %arg9: memref<32x1xf32, #tpu.memory_space<vmem>>, %arg10: memref<1x1xf32, #tpu.memory_space<vmem>>, %arg11: memref<1x512xf32, #tpu.memory_space<vmem>>) attributes {dimension_semantics = [#tpu.dimension_semantics<parallel>], iteration_bounds = array<i64: 8>, scalar_prefetch = 0 : i64, scratch_operands = 0 : i64, tpu.core_type = #tpu.core_type<tc>, window_params = [{transform_indices = @transform_0, window_bounds = array<i64: 512, 32>}, {pipeline_mode = #tpu.pipeline_mode<synchronous>, transform_indices = @transform_1, window_bounds = array<i64: 128, 32>}, {pipeline_mode = #tpu.pipeline_mode<synchronous>, transform_indices = @transform_2, window_bounds = array<i64: 128, 1>}, {pipeline_mode = #tpu.pipeline_mode<synchronous>, transform_indices = @transform_3, window_bounds = array<i64: 2, 32, 32>}, {pipeline_mode = #tpu.pipeline_mode<synchronous>, transform_indices = @transform_4, window_bounds = array<i64: 2, 32, 1>}, {pipeline_mode = #tpu.pipeline_mode<synchronous>, transform_indices = @transform_5, window_bounds = array<i64: 32, 64>}, {pipeline_mode = #tpu.pipeline_mode<synchronous>, transform_indices = @transform_6, window_bounds = array<i64: 32, 1>}, {pipeline_mode = #tpu.pipeline_mode<synchronous>, transform_indices = @transform_7, window_bounds = array<i64: 32, 1>}, {pipeline_mode = #tpu.pipeline_mode<synchronous>, transform_indices = @transform_8, window_bounds = array<i64: 32, 1>}, {pipeline_mode = #tpu.pipeline_mode<synchronous>, transform_indices = @transform_9, window_bounds = array<i64: 1, 1>}, {transform_indices = @transform_10, window_bounds = array<i64: 1, 512>}]} {
    %c0 = arith.constant 0 : index
    %c0_0 = arith.constant 0 : index
    %0 = vector.load %arg1[%c0, %c0_0] : memref<512x32xbf16, #tpu.memory_space<vmem>>, vector<512x32xbf16>
    %c0_1 = arith.constant 0 : index
    %c0_2 = arith.constant 0 : index
    %1 = vector.load %arg2[%c0_1, %c0_2] : memref<128x32xbf16, #tpu.memory_space<vmem>>, vector<128x32xbf16>
    %cst = arith.constant dense<0.000000e+00> : vector<128x512xf32>
    %2 = tpu.matmul %1, %0, %cst {dimension_numbers = #tpu.dot_dimension_numbers<[1], [1], [0], [0], [0, 0, 1, 0], [], []>} : vector<128x32xbf16>, vector<512x32xbf16>, vector<128x512xf32> -> vector<128x512xf32>
    %c0_3 = arith.constant 0 : index
    %c0_4 = arith.constant 0 : index
    %3 = vector.load %arg3[%c0_3, %c0_4] : memref<128x1xf32, #tpu.memory_space<vmem>>, vector<128x1xf32>
    %4 = vector.broadcast %3 : vector<128x1xf32> to vector<128x512xf32>
    %5 = arith.addf %2, %4 : vector<128x512xf32>
    %6 = vector.extract_strided_slice %5 {offsets = [0, 0], sizes = [32, 512], strides = [1, 1]} : vector<128x512xf32> to vector<32x512xf32>
    %7 = vector.extract_strided_slice %5 {offsets = [32, 0], sizes = [32, 512], strides = [1, 1]} : vector<128x512xf32> to vector<32x512xf32>
    %8 = arith.mulf %6, %7 : vector<32x512xf32>
    %9 = vector.extract_strided_slice %5 {offsets = [64, 0], sizes = [64, 512], strides = [1, 1]} : vector<128x512xf32> to vector<64x512xf32>
    %cst_5 = arith.constant 0.000000e+00 : f32
    %10 = vector.broadcast %cst_5 : f32 to vector<64x512xf32>
    %11 = arith.maximumf %9, %10 : vector<64x512xf32>
    %c0_6 = arith.constant 0 : index
    %c0_7 = arith.constant 0 : index
    %c0_8 = arith.constant 0 : index
    %12 = vector.load %arg4[%c0_6, %c0_7, %c0_8] : memref<2x32x32xbf16, #tpu.memory_space<vmem>>, vector<1x32x32xbf16>
    %13 = vector.shape_cast %12 : vector<1x32x32xbf16> to vector<32x32xbf16>
    %14 = arith.truncf %8 : vector<32x512xf32> to vector<32x512xbf16>
    %cst_9 = arith.constant dense<0.000000e+00> : vector<32x512xf32>
    %15 = tpu.matmul %13, %14, %cst_9 {dimension_numbers = #tpu.dot_dimension_numbers<[1], [0], [0], [1], [0, 0, 1, 1], [], []>} : vector<32x32xbf16>, vector<32x512xbf16>, vector<32x512xf32> -> vector<32x512xf32>
    %c0_10 = arith.constant 0 : index
    %c0_11 = arith.constant 0 : index
    %c0_12 = arith.constant 0 : index
    %16 = vector.load %arg5[%c0_10, %c0_11, %c0_12] : memref<2x32x1xf32, #tpu.memory_space<vmem>>, vector<1x32x1xf32>
    %17 = vector.shape_cast %16 : vector<1x32x1xf32> to vector<32x1xf32>
    %18 = vector.broadcast %17 : vector<32x1xf32> to vector<32x512xf32>
    %19 = arith.addf %15, %18 : vector<32x512xf32>
    %20 = arith.mulf %6, %19 : vector<32x512xf32>
    %21 = arith.addf %20, %8 : vector<32x512xf32>
    %c1 = arith.constant 1 : index
    %c0_13 = arith.constant 0 : index
    %c0_14 = arith.constant 0 : index
    %22 = vector.load %arg4[%c1, %c0_13, %c0_14] : memref<2x32x32xbf16, #tpu.memory_space<vmem>>, vector<1x32x32xbf16>
    %23 = vector.shape_cast %22 : vector<1x32x32xbf16> to vector<32x32xbf16>
    %24 = arith.truncf %21 : vector<32x512xf32> to vector<32x512xbf16>
    %cst_15 = arith.constant dense<0.000000e+00> : vector<32x512xf32>
    %25 = tpu.matmul %23, %24, %cst_15 {dimension_numbers = #tpu.dot_dimension_numbers<[1], [0], [0], [1], [0, 0, 1, 1], [], []>} : vector<32x32xbf16>, vector<32x512xbf16>, vector<32x512xf32> -> vector<32x512xf32>
    %c1_16 = arith.constant 1 : index
    %c0_17 = arith.constant 0 : index
    %c0_18 = arith.constant 0 : index
    %26 = vector.load %arg5[%c1_16, %c0_17, %c0_18] : memref<2x32x1xf32, #tpu.memory_space<vmem>>, vector<1x32x1xf32>
    %27 = vector.shape_cast %26 : vector<1x32x1xf32> to vector<32x1xf32>
    %28 = vector.broadcast %27 : vector<32x1xf32> to vector<32x512xf32>
    %29 = arith.addf %25, %28 : vector<32x512xf32>
    %30 = arith.mulf %6, %29 : vector<32x512xf32>
    %31 = arith.addf %30, %21 : vector<32x512xf32>
    %c0_19 = arith.constant 0 : index
    %c0_20 = arith.constant 0 : index
    %32 = vector.load %arg6[%c0_19, %c0_20] : memref<32x64xbf16, #tpu.memory_space<vmem>>, vector<32x64xbf16>
    %33 = arith.truncf %11 : vector<64x512xf32> to vector<64x512xbf16>
    %cst_21 = arith.constant dense<0.000000e+00> : vector<32x512xf32>
    %34 = tpu.matmul %32, %33, %cst_21 {dimension_numbers = #tpu.dot_dimension_numbers<[1], [0], [0], [1], [0, 0, 1, 1], [], []>} : vector<32x64xbf16>, vector<64x512xbf16>, vector<32x512xf32> -> vector<32x512xf32>
    %c0_22 = arith.constant 0 : index
    %c0_23 = arith.constant 0 : index
    %35 = vector.load %arg7[%c0_22, %c0_23] : memref<32x1xf32, #tpu.memory_space<vmem>>, vector<32x1xf32>
    %36 = vector.broadcast %35 : vector<32x1xf32> to vector<32x512xf32>
    %37 = arith.addf %34, %36 : vector<32x512xf32>
    %cst_24 = arith.constant 0.000000e+00 : f32
    %38 = vector.broadcast %cst_24 : f32 to vector<32x512xf32>
    %39 = arith.maximumf %37, %38 : vector<32x512xf32>
    %c0_25 = arith.constant 0 : index
    %c0_26 = arith.constant 0 : index
    %40 = vector.load %arg8[%c0_25, %c0_26] : memref<32x1xf32, #tpu.memory_space<vmem>>, vector<32x1xf32>
    %41 = vector.broadcast %40 : vector<32x1xf32> to vector<32x512xf32>
    %42 = arith.mulf %31, %41 : vector<32x512xf32>
    %cst_27 = arith.constant dense<0.000000e+00> : vector<512xf32>
    %43 = vector.multi_reduction <add>, %42, %cst_27 [0] : vector<32x512xf32> to vector<512xf32>
    %44 = vector.shape_cast %43 : vector<512xf32> to vector<1x512xf32>
    %c0_28 = arith.constant 0 : index
    %c0_29 = arith.constant 0 : index
    %45 = vector.load %arg9[%c0_28, %c0_29] : memref<32x1xf32, #tpu.memory_space<vmem>>, vector<32x1xf32>
    %46 = vector.broadcast %45 : vector<32x1xf32> to vector<32x512xf32>
    %47 = arith.mulf %39, %46 : vector<32x512xf32>
    %cst_30 = arith.constant dense<0.000000e+00> : vector<512xf32>
    %48 = vector.multi_reduction <add>, %47, %cst_30 [0] : vector<32x512xf32> to vector<512xf32>
    %49 = vector.shape_cast %48 : vector<512xf32> to vector<1x512xf32>
    %50 = arith.addf %44, %49 : vector<1x512xf32>
    %c0_31 = arith.constant 0 : index
    %c0_32 = arith.constant 0 : index
    %51 = vector.load %arg10[%c0_31, %c0_32] : memref<1x1xf32, #tpu.memory_space<vmem>>, vector<1x1xf32>
    %52 = vector.broadcast %51 : vector<1x1xf32> to vector<1x512xf32>
    %53 = arith.addf %50, %52 : vector<1x512xf32>
    %c0_33 = arith.constant 0 : index
    %c0_34 = arith.constant 0 : index
    %54 = vector.load %arg11[%c0_33, %c0_34] : memref<1x512xf32, #tpu.memory_space<vmem>>, vector<1x512xf32>
    tpu.vector_store %arg11[%c0_33, %c0_34], %53 {strides = array<i32>} : memref<1x512xf32, #tpu.memory_space<vmem>>, vector<1x512xf32>,
    return
  }
  func.func @transform_0(%arg0: i32) -> (i32, i32) {
    %c0_i32 = arith.constant 0 : i32
    %c0_i32_0 = arith.constant 0 : i32
    return %arg0, %c0_i32 : i32, i32
  }
  func.func @transform_1(%arg0: i32) -> (i32, i32) {
    %c0_i32 = arith.constant 0 : i32
    %c0_i32_0 = arith.constant 0 : i32
    %c0_i32_1 = arith.constant 0 : i32
    return %c0_i32, %c0_i32_0 : i32, i32
  }
  func.func @transform_2(%arg0: i32) -> (i32, i32) {
    %c0_i32 = arith.constant 0 : i32
    %c0_i32_0 = arith.constant 0 : i32
    %c0_i32_1 = arith.constant 0 : i32
    return %c0_i32, %c0_i32_0 : i32, i32
  }
  func.func @transform_3(%arg0: i32) -> (i32, i32, i32) {
    %c0_i32 = arith.constant 0 : i32
    %c0_i32_0 = arith.constant 0 : i32
    %c0_i32_1 = arith.constant 0 : i32
    %c0_i32_2 = arith.constant 0 : i32
    return %c0_i32, %c0_i32_0, %c0_i32_1 : i32, i32, i32
  }
  func.func @transform_4(%arg0: i32) -> (i32, i32, i32) {
    %c0_i32 = arith.constant 0 : i32
    %c0_i32_0 = arith.constant 0 : i32
    %c0_i32_1 = arith.constant 0 : i32
    %c0_i32_2 = arith.constant 0 : i32
    return %c0_i32, %c0_i32_0, %c0_i32_1 : i32, i32, i32
  }
  func.func @transform_5(%arg0: i32) -> (i32, i32) {
    %c0_i32 = arith.constant 0 : i32
    %c0_i32_0 = arith.constant 0 : i32
    %c0_i32_1 = arith.constant 0 : i32
    return %c0_i32, %c0_i32_0 : i32, i32
  }
  func.func @transform_6(%arg0: i32) -> (i32, i32) {
    %c0_i32 = arith.constant 0 : i32
    %c0_i32_0 = arith.constant 0 : i32
    %c0_i32_1 = arith.constant 0 : i32
    return %c0_i32, %c0_i32_0 : i32, i32
  }
  func.func @transform_7(%arg0: i32) -> (i32, i32) {
    %c0_i32 = arith.constant 0 : i32
    %c0_i32_0 = arith.constant 0 : i32
    %c0_i32_1 = arith.constant 0 : i32
    return %c0_i32, %c0_i32_0 : i32, i32
  }
  func.func @transform_8(%arg0: i32) -> (i32, i32) {
    %c0_i32 = arith.constant 0 : i32
    %c0_i32_0 = arith.constant 0 : i32
    %c0_i32_1 = arith.constant 0 : i32
    return %c0_i32, %c0_i32_0 : i32, i32
  }
  func.func @transform_9(%arg0: i32) -> (i32, i32) {
    %c0_i32 = arith.constant 0 : i32
    %c0_i32_0 = arith.constant 0 : i32
    %c0_i32_1 = arith.constant 0 : i32
    return %c0_i32, %c0_i32_0 : i32, i32
  }
  func.func @transform_10(%arg0: i32) -> (i32, i32) {
    %c0_i32 = arith.constant 0 : i32
    %c0_i32_0 = arith.constant 0 : i32
    return %c0_i32, %arg0 : i32, i32
  }
}

</mosaic_0001>

<llo_original>
// kernel: dcnv2_forward.1
$region0: #{dcnv2_forward.1}
  #allocation0 [shape = 'u32[]', space=smem, size = 0x4, offset = 0x4, fixed_abs, tag = 'smem constant byte address 0x4 - core index']
  #allocation1 [shape = 'u32[144,128]{1,0:T(1,128)}', space=vmem, size = 0x12000, scoped, tag = 'internal scratch']
  #allocation2 [shape = 'f32[1,1]{1,0:T(1,128)S(1)}', space=vmem, size = 0x200, scoped, tag = 'scoped memory for dcnv2_forward.1']
  %s0 = inlined_call_operand.vmem [shape: bf16[4096,32], index: 0, kind: input, shape index: {}]
  %s1 = inlined_call_operand.vmem [shape: bf16[128,32], index: 1, kind: input, shape index: {}]
  %s2 = inlined_call_operand.vmem [shape: f32[128,1], index: 2, kind: input, shape index: {}]
  %s3 = inlined_call_operand.vmem [shape: bf16[2,32,32], index: 3, kind: input, shape index: {}]
  %s4 = inlined_call_operand.vmem [shape: f32[2,32,1], index: 4, kind: input, shape index: {}]
  %s5 = inlined_call_operand.vmem [shape: bf16[32,64], index: 5, kind: input, shape index: {}]
  %s6 = inlined_call_operand.vmem [shape: f32[32,1], index: 6, kind: input, shape index: {}]
  %s7 = inlined_call_operand.vmem [shape: f32[32,1], index: 7, kind: input, shape index: {}]
  %s8 = inlined_call_operand.vmem [shape: f32[32,1], index: 8, kind: input, shape index: {}]
  %s9 = inlined_call_operand.<no memory space> [shape: f32[1,1], index: 9, kind: input, shape index: {}]
  %s10 = inlined_call_operand.hbm [shape: f32[1,4096], index: 10, kind: output, shape index: {}]
  %s11 = sld [smem:[#allocation0]]
  $region73: #{dcnv2_forward.1} parent=0
    _
  %s13 = ssub.s32 1, %s11
  %s14 = scalar_select 0, %s13, %s11
  %v15 = vstv %s9
  %16 = vst [vmem:[#allocation2] sm:$0x1] %v15
  $region1: #{dcnv2_forward.1} parent=0
    #allocation3 [shape = 'u8[4096]{0}', space=vmem, size = 0x1000, scoped, tag = 'output window, operand 0']
    #allocation4 [shape = 's32[2]{0}', space=sflag, size = 0x8, scoped, tag = 'scoped memory for dcnv2_forward.1']
    %17 = vsyncpa [#allocation4], 0
    %s18 = scalar_lea.sflag [#allocation4], 1
    %19 = vsyncpa %s18, 0
    loop: start=0, step=1, limit=10
    $region2: #{dcnv2_forward.1} parent=1 // loop_pre_header
      _
    $region3: #{dcnv2_forward.1} parent=1 // loop_header
      %s21 = sphi 0, %s25
      %p22 = scmp.ge.s32.totalorder %s21, 10
      %s31 = sphi 0, %s33
      %s34 = sphi 0, %s31
      %s35 = sphi 0, %s34
      %s51 = sphi 0, %s35
      %s55 = sphi 0, %s55
      %s57 = sphi 0, %s55
      %s58 = sphi 0, %s57
      %s72 = sphi 0, %s58
      %s76 = sphi 0, %s76
      %s78 = sphi 0, %s76
      %s79 = sphi 0, %s78
      %s93 = sphi 0, %s79
      %s97 = sphi 0, %s97
      %s99 = sphi 0, %s97
      %s100 = sphi 0, %s99
      %s114 = sphi 0, %s100
      %s118 = sphi 0, %s118
      %s120 = sphi 0, %s118
      %s121 = sphi 0, %s120
      %s135 = sphi 0, %s121
      %s139 = sphi 0, %s139
      %s141 = sphi 0, %s139
      %s142 = sphi 0, %s141
      %s156 = sphi 0, %s142
      %s160 = sphi 0, %s160
      %s162 = sphi 0, %s160
      %s163 = sphi 0, %s162
      %s177 = sphi 0, %s163
      %s181 = sphi 0, %s181
      %s183 = sphi 0, %s181
      %s184 = sphi 0, %s183
      %s198 = sphi 0, %s184
      %s202 = sphi 0, %s202
      %s204 = sphi 0, %s202
      %s205 = sphi 0, %s204
      %s219 = sphi 0, %s205
      %s223 = sphi 0, %s223
      %s225 = sphi 0, %s223
      %s226 = sphi 0, %s225
      %s240 = sphi 0, %s226
      %s246 = sphi 0, %s248
      %s249 = sphi 0, %s246
      %s250 = sphi 0, %s249
      %s266 = sphi 0, %s250
    $region4: #{dcnv2_forward.1} parent=1 // loop_header_branch
      %24 = sbr.rel (%p22) target = $region8
    $region5: #{dcnv2_forward.1} parent=1 // loop_body
      %s26 = ssub.s32 %s21, 1
      %s27 = ssub.s32 %s21, 2
      %s28 = sadd.s32 %s21, 1
      %s29 = ssub.s32 %s21, %s28
      %p30 = scmp.eq.s32.totalorder %s29, 0
      %s32 = sadd.s32 %s31, 1
      %s33 = scalar_select %p30, %s31, %s32
      %p36 = pneg %p30
      %p37 = scmp.eq.s32.totalorder %s21, 7
      %p38 = por %p36, %p37
      %p39 = scmp.ne.s32.totalorder %s31, %s34
      %p40 = scmp.eq.s32.totalorder %s21, 0
      %p41 = por %p39, %p40
      %p42 = scmp.ne.s32.totalorder %s31, %s34
      %p43 = scmp.eq.s32.totalorder %s26, 7
      %p44 = por %p42, %p43
      %p45 = scmp.ne.s32.totalorder %s34, %s35
      %p46 = scmp.eq.s32.totalorder %s26, 0
      %p47 = por %p45, %p46
      %p48 = scmp.ne.s32.totalorder %s34, %s35
      %p49 = scmp.eq.s32.totalorder %s27, 7
      %p50 = por %p48, %p49
      %p52 = scmp.ne.s32.totalorder %s35, %s51
      %p53 = scmp.eq.s32.totalorder %s27, 0
      %p54 = por %p52, %p53
      %s56 = sadd.s32 %s55, 1
      %p59 = scmp.eq.s32.totalorder %s21, 7
      %p60 = scmp.ne.s32.totalorder %s55, %s57
      %p61 = scmp.eq.s32.totalorder %s21, 0
      %p62 = por %p60, %p61
      %p63 = scmp.ne.s32.totalorder %s55, %s57
      %p64 = scmp.eq.s32.totalorder %s26, 7
      %p65 = por %p63, %p64
      %p66 = scmp.ne.s32.totalorder %s57, %s58
      %p67 = scmp.eq.s32.totalorder %s26, 0
      %p68 = por %p66, %p67
      %p69 = scmp.ne.s32.totalorder %s57, %s58
      %p70 = scmp.eq.s32.totalorder %s27, 7
      %p71 = por %p69, %p70
      %p73 = scmp.ne.s32.totalorder %s58, %s72
      %p74 = scmp.eq.s32.totalorder %s27, 0
      %p75 = por %p73, %p74
      %s77 = sadd.s32 %s76, 1
      %p80 = scmp.eq.s32.totalorder %s21, 7
      %p81 = scmp.ne.s32.totalorder %s76, %s78
      %p82 = scmp.eq.s32.totalorder %s21, 0
      %p83 = por %p81, %p82
      %p84 = scmp.ne.s32.totalorder %s76, %s78
      %p85 = scmp.eq.s32.totalorder %s26, 7
      %p86 = por %p84, %p85
      %p87 = scmp.ne.s32.totalorder %s78, %s79
      %p88 = scmp.eq.s32.totalorder %s26, 0
      %p89 = por %p87, %p88
      %p90 = scmp.ne.s32.totalorder %s78, %s79
      %p91 = scmp.eq.s32.totalorder %s27, 7
      %p92 = por %p90, %p91
      %p94 = scmp.ne.s32.totalorder %s79, %s93
      %p95 = scmp.eq.s32.totalorder %s27, 0
      %p96 = por %p94, %p95
      %s98 = sadd.s32 %s97, 1
      %p101 = scmp.eq.s32.totalorder %s21, 7
      %p102 = scmp.ne.s32.totalorder %s97, %s99
      %p103 = scmp.eq.s32.totalorder %s21, 0
      %p104 = por %p102, %p103
      %p105 = scmp.ne.s32.totalorder %s97, %s99
      %p106 = scmp.eq.s32.totalorder %s26, 7
      %p107 = por %p105, %p106
      %p108 = scmp.ne.s32.totalorder %s99, %s100
      %p109 = scmp.eq.s32.totalorder %s26, 0
      %p110 = por %p108, %p109
      %p111 = scmp.ne.s32.totalorder %s99, %s100
      %p112 = scmp.eq.s32.totalorder %s27, 7
      %p113 = por %p111, %p112
      %p115 = scmp.ne.s32.totalorder %s100, %s114
      %p116 = scmp.eq.s32.totalorder %s27, 0
      %p117 = por %p115, %p116
      %s119 = sadd.s32 %s118, 1
      %p122 = scmp.eq.s32.totalorder %s21, 7
      %p123 = scmp.ne.s32.totalorder %s118, %s120
      %p124 = scmp.eq.s32.totalorder %s21, 0
      %p125 = por %p123, %p124
      %p126 = scmp.ne.s32.totalorder %s118, %s120
      %p127 = scmp.eq.s32.totalorder %s26, 7
      %p128 = por %p126, %p127
      %p129 = scmp.ne.s32.totalorder %s120, %s121
      %p130 = scmp.eq.s32.totalorder %s26, 0
      %p131 = por %p129, %p130
      %p132 = scmp.ne.s32.totalorder %s120, %s121
      %p133 = scmp.eq.s32.totalorder %s27, 7
      %p134 = por %p132, %p133
      %p136 = scmp.ne.s32.totalorder %s121, %s135
      %p137 = scmp.eq.s32.totalorder %s27, 0
      %p138 = por %p136, %p137
      %s140 = sadd.s32 %s139, 1
      %p143 = scmp.eq.s32.totalorder %s21, 7
      %p144 = scmp.ne.s32.totalorder %s139, %s141
      %p145 = scmp.eq.s32.totalorder %s21, 0
      %p146 = por %p144, %p145
      %p147 = scmp.ne.s32.totalorder %s139, %s141
      %p148 = scmp.eq.s32.totalorder %s26, 7
      %p149 = por %p147, %p148
      %p150 = scmp.ne.s32.totalorder %s141, %s142
      %p151 = scmp.eq.s32.totalorder %s26, 0
      %p152 = por %p150, %p151
      %p153 = scmp.ne.s32.totalorder %s141, %s142
      %p154 = scmp.eq.s32.totalorder %s27, 7
      %p155 = por %p153, %p154
      %p157 = scmp.ne.s32.totalorder %s142, %s156
      %p158 = scmp.eq.s32.totalorder %s27, 0
      %p159 = por %p157, %p158
      %s161 = sadd.s32 %s160, 1
      %p164 = scmp.eq.s32.totalorder %s21, 7
      %p165 = scmp.ne.s32.totalorder %s160, %s162
      %p166 = scmp.eq.s32.totalorder %s21, 0
      %p167 = por %p165, %p166
      %p168 = scmp.ne.s32.totalorder %s160, %s162
      %p169 = scmp.eq.s32.totalorder %s26, 7
      %p170 = por %p168, %p169
      %p171 = scmp.ne.s32.totalorder %s162, %s163
      %p172 = scmp.eq.s32.totalorder %s26, 0
      %p173 = por %p171, %p172
      %p174 = scmp.ne.s32.totalorder %s162, %s163
      %p175 = scmp.eq.s32.totalorder %s27, 7
      %p176 = por %p174, %p175
      %p178 = scmp.ne.s32.totalorder %s163, %s177
      %p179 = scmp.eq.s32.totalorder %s27, 0
      %p180 = por %p178, %p179
      %s182 = sadd.s32 %s181, 1
      %p185 = scmp.eq.s32.totalorder %s21, 7
      %p186 = scmp.ne.s32.totalorder %s181, %s183
      %p187 = scmp.eq.s32.totalorder %s21, 0
      %p188 = por %p186, %p187
      %p189 = scmp.ne.s32.totalorder %s181, %s183
      %p190 = scmp.eq.s32.totalorder %s26, 7
      %p191 = por %p189, %p190
      %p192 = scmp.ne.s32.totalorder %s183, %s184
      %p193 = scmp.eq.s32.totalorder %s26, 0
      %p194 = por %p192, %p193
      %p195 = scmp.ne.s32.totalorder %s183, %s184
      %p196 = scmp.eq.s32.totalorder %s27, 7
      %p197 = por %p195, %p196
      %p199 = scmp.ne.s32.totalorder %s184, %s198
      %p200 = scmp.eq.s32.totalorder %s27, 0
      %p201 = por %p199, %p200
      %s203 = sadd.s32 %s202, 1
      %p206 = scmp.eq.s32.totalorder %s21, 7
      %p207 = scmp.ne.s32.totalorder %s202, %s204
      %p208 = scmp.eq.s32.totalorder %s21, 0
      %p209 = por %p207, %p208
      %p210 = scmp.ne.s32.totalorder %s202, %s204
      %p211 = scmp.eq.s32.totalorder %s26, 7
      %p212 = por %p210, %p211
      %p213 = scmp.ne.s32.totalorder %s204, %s205
      %p214 = scmp.eq.s32.totalorder %s26, 0
      %p215 = por %p213, %p214
      %p216 = scmp.ne.s32.totalorder %s204, %s205
      %p217 = scmp.eq.s32.totalorder %s27, 7
      %p218 = por %p216, %p217
      %p220 = scmp.ne.s32.totalorder %s205, %s219
      %p221 = scmp.eq.s32.totalorder %s27, 0
      %p222 = por %p220, %p221
      %s224 = sadd.s32 %s223, 1
      %p227 = scmp.eq.s32.totalorder %s21, 7
      %p228 = scmp.ne.s32.totalorder %s223, %s225
      %p229 = scmp.eq.s32.totalorder %s21, 0
      %p230 = por %p228, %p229
      %p231 = scmp.ne.s32.totalorder %s223, %s225
      %p232 = scmp.eq.s32.totalorder %s26, 7
      %p233 = por %p231, %p232
      %p234 = scmp.ne.s32.totalorder %s225, %s226
      %p235 = scmp.eq.s32.totalorder %s26, 0
      %p236 = por %p234, %p235
      %p237 = scmp.ne.s32.totalorder %s225, %s226
      %p238 = scmp.eq.s32.totalorder %s27, 7
      %p239 = por %p237, %p238
      %p241 = scmp.ne.s32.totalorder %s226, %s240
      %p242 = scmp.eq.s32.totalorder %s27, 0
      %p243 = por %p241, %p242
      %s244 = ssub.s32 %s21, %s28
      %p245 = scmp.eq.s32.totalorder %s244, 0
      %s247 = sadd.s32 %s246, 1
      %s248 = scalar_select %p245, %s246, %s247
      %p251 = pneg %p245
      %p252 = scmp.eq.s32.totalorder %s21, 7
      %p253 = por %p251, %p252
      %p254 = scmp.ne.s32.totalorder %s246, %s249
      %p255 = scmp.eq.s32.totalorder %s21, 0
      %p256 = por %p254, %p255
      %p257 = scmp.ne.s32.totalorder %s246, %s249
      %p258 = scmp.eq.s32.totalorder %s26, 7
      %p259 = por %p257, %p258
      %p260 = scmp.ne.s32.totalorder %s249, %s250
      %p261 = scmp.eq.s32.totalorder %s26, 0
      %p262 = por %p260, %p261
      %p263 = scmp.ne.s32.totalorder %s249, %s250
      %p264 = scmp.eq.s32.totalorder %s27, 7
      %p265 = por %p263, %p264
      %p267 = scmp.ne.s32.totalorder %s250, %s266
      %p268 = scmp.eq.s32.totalorder %s27, 0
      %p269 = por %p267, %p268
      %p270 = scmp.le.s32.totalorder 1, %s21
      %p271 = scmp.lt.s32.totalorder %s21, 9
      %p272 = pnand %p270, %p271
      %p273 = pneg %p272
      // Predicated region
      $region9: #{dcnv2_forward.1} parent=5 // pred_check
        _
      $region10: #{dcnv2_forward.1} parent=5 // pred_check_branch
        %275 = sbr.rel (%p272) target = $region12
      $region11: #{dcnv2_forward.1} parent=5 // pred_region
        %s276 = ssub.s32 %s21, 1
        // Predicated region
        $region13: #{dcnv2_forward.1} parent=11 // pred_check
          %p277 = pneg %p68
        $region14: #{dcnv2_forward.1} parent=11 // pred_check_branch
          %279 = sbr.rel (%p277) target = $region16
        $region15: #{dcnv2_forward.1} parent=11 // pred_region
          _
        $region16: #{dcnv2_forward.1} parent=11 // pred_fallthru
          _
        // Predicated region
        $region17: #{dcnv2_forward.1} parent=11 // pred_check
          %p280 = pneg %p89
        $region18: #{dcnv2_forward.1} parent=11 // pred_check_branch
          %282 = sbr.rel (%p280) target = $region20
        $region19: #{dcnv2_forward.1} parent=11 // pred_region
          _
        $region20: #{dcnv2_forward.1} parent=11 // pred_fallthru
          _
        // Predicated region
        $region21: #{dcnv2_forward.1} parent=11 // pred_check
          %p283 = pneg %p110
        $region22: #{dcnv2_forward.1} parent=11 // pred_check_branch
          %285 = sbr.rel (%p283) target = $region24
        $region23: #{dcnv2_forward.1} parent=11 // pred_region
          _
        $region24: #{dcnv2_forward.1} parent=11 // pred_fallthru
          _
        // Predicated region
        $region25: #{dcnv2_forward.1} parent=11 // pred_check
          %p286 = pneg %p131
        $region26: #{dcnv2_forward.1} parent=11 // pred_check_branch
          %288 = sbr.rel (%p286) target = $region28
        $region27: #{dcnv2_forward.1} parent=11 // pred_region
          _
        $region28: #{dcnv2_forward.1} parent=11 // pred_fallthru
          _
        // Predicated region
        $region29: #{dcnv2_forward.1} parent=11 // pred_check
          %p289 = pneg %p152
        $region30: #{dcnv2_forward.1} parent=11 // pred_check_branch
          %291 = sbr.rel (%p289) target = $region32
        $region31: #{dcnv2_forward.1} parent=11 // pred_region
          _
        $region32: #{dcnv2_forward.1} parent=11 // pred_fallthru
          _
        // Predicated region
        $region33: #{dcnv2_forward.1} parent=11 // pred_check
          %p292 = pneg %p173
        $region34: #{dcnv2_forward.1} parent=11 // pred_check_branch
          %294 = sbr.rel (%p292) target = $region36
        $region35: #{dcnv2_forward.1} parent=11 // pred_region
          _
        $region36: #{dcnv2_forward.1} parent=11 // pred_fallthru
          _
        // Predicated region
        $region37: #{dcnv2_forward.1} parent=11 // pred_check
          %p295 = pneg %p194
        $region38: #{dcnv2_forward.1} parent=11 // pred_check_branch
          %297 = sbr.rel (%p295) target = $region40
        $region39: #{dcnv2_forward.1} parent=11 // pred_region
          _
        $region40: #{dcnv2_forward.1} parent=11 // pred_fallthru
          _
        // Predicated region
        $region41: #{dcnv2_forward.1} parent=11 // pred_check
          %p298 = pneg %p215
        $region42: #{dcnv2_forward.1} parent=11 // pred_check_branch
          %300 = sbr.rel (%p298) target = $region44
        $region43: #{dcnv2_forward.1} parent=11 // pred_region
          _
        $region44: #{dcnv2_forward.1} parent=11 // pred_fallthru
          _
        // Predicated region
        $region45: #{dcnv2_forward.1} parent=11 // pred_check
          %p301 = pneg %p236
        $region46: #{dcnv2_forward.1} parent=11 // pred_check_branch
          %303 = sbr.rel (%p301) target = $region48
        $region47: #{dcnv2_forward.1} parent=11 // pred_region
          _
        $region48: #{dcnv2_forward.1} parent=11 // pred_fallthru
          _
      $region12: #{dcnv2_forward.1} parent=5 // pred_fallthru
        _
      %p304 = scmp.lt.s32.totalorder %s21, 8
      // Predicated region
      $region49: #{dcnv2_forward.1} parent=5 // pred_check
        %p305 = pneg %p304
      $region50: #{dcnv2_forward.1} parent=5 // pred_check_branch
        %307 = sbr.rel (%p305) target = $region52
      $region51: #{dcnv2_forward.1} parent=5 // pred_region
        // Predicated region
        $region53: #{dcnv2_forward.1} parent=51 // pred_check
          %p308 = pneg %p41
        $region54: #{dcnv2_forward.1} parent=51 // pred_check_branch
          %310 = sbr.rel (%p308) target = $region56
        $region55: #{dcnv2_forward.1} parent=51 // pred_region
          %s311 = smul.u32 64, %s21
          %p312 = scmp.lt.s32.totalorder %s311, 511
          %s313 = scalar_select %p312, %s311, 511
          %s314 = smul.addr %s313, 4
          %s315 = scalar_lea.vmem %s0, %s314
          %s316 = smul.u32 64, %s21
        $region56: #{dcnv2_forward.1} parent=51 // pred_fallthru
          _
      $region52: #{dcnv2_forward.1} parent=5 // pred_fallthru
        _
      %p317 = scmp.le.s32.totalorder 1, %s21
      %p318 = scmp.lt.s32.totalorder %s21, 9
      %p319 = pnand %p317, %p318
      %p320 = pneg %p319
      // Predicated region
      $region57: #{dcnv2_forward.1} parent=5 // pred_check
        _
      $region58: #{dcnv2_forward.1} parent=5 // pred_check_branch
        %322 = sbr.rel (%p319) target = $region60
      $region59: #{dcnv2_forward.1} parent=5 // pred_region
        %s323 = ssub.s32 %s21, 1
        %s324 = smul.u32 64, %s26
        %p325 = scmp.lt.s32.totalorder %s324, 511
        %s326 = scalar_select %p325, %s324, 511
        %s327 = smul.addr %s326, 4
        %s328 = scalar_lea.vmem %s0, %s327
        %p329 = pneg %p47
        %p330 = pneg %p44
        %p331 = pneg %p68
        %p332 = pneg %p65
        %p333 = pneg %p89
        %p334 = pneg %p86
        %p335 = pneg %p110
        %p336 = pneg %p107
        %p337 = pneg %p131
        %p338 = pneg %p128
        %p339 = pneg %p152
        %p340 = pneg %p149
        %p341 = pneg %p173
        %p342 = pneg %p170
        %p343 = pneg %p194
        %p344 = pneg %p191
        %p345 = pneg %p215
        %p346 = pneg %p212
        %p347 = pneg %p236
        %p348 = pneg %p233
        %p349 = pneg %p262
        %p350 = pneg %p259
        %s351 = sand.u32 %s249, 1
        %s352 = scalar_lea.sflag [#allocation4], %s351
        %s353 = sand.u32 %s249, 1
        %s354 = smul.addr %s353, 4
        %s355 = scalar_lea.vmem [#allocation3], %s354
        %s356 = smul.u32 64, %s26
        %p357 = scmp.lt.s32.totalorder %s356, 511
        %s358 = scalar_select %p357, %s356, 511
        %s359 = smul.addr %s358, 4
        %s360 = scalar_lea.vmem %s0, %s359
        %s361 = smul.u32 64, %s26
        %s362 = smul.u32 4, %s26
        %v364 = vld [vmem:[%s360] sm:$0xf]
        %v365 = vld [vmem:[%s360 + $0x4] sm:$0xf]
        %v366 = vld [vmem:[%s360 + $0x8] sm:$0xf]
        %v367 = vld [vmem:[%s360 + $0xc] sm:$0xf]
        %v368 = vld [vmem:[%s360 + $0x10] sm:$0xf]
        %v369 = vld [vmem:[%s360 + $0x14] sm:$0xf]
        %v370 = vld [vmem:[%s360 + $0x18] sm:$0xf]
        %v371 = vld [vmem:[%s360 + $0x1c] sm:$0xf]
        %v372 = vld [vmem:[%s360 + $0x20] sm:$0xf]
        %v373 = vld [vmem:[%s360 + $0x24] sm:$0xf]
        %v374 = vld [vmem:[%s360 + $0x28] sm:$0xf]
        %v375 = vld [vmem:[%s360 + $0x2c] sm:$0xf]
        %v376 = vld [vmem:[%s360 + $0x30] sm:$0xf]
        %v377 = vld [vmem:[%s360 + $0x34] sm:$0xf]
        %v378 = vld [vmem:[%s360 + $0x38] sm:$0xf]
        %v379 = vld [vmem:[%s360 + $0x3c] sm:$0xf]
        %v380 = vld [vmem:[%s360 + $0x40] sm:$0xf]
        %v381 = vld [vmem:[%s360 + $0x44] sm:$0xf]
        %v382 = vld [vmem:[%s360 + $0x48] sm:$0xf]
        %v383 = vld [vmem:[%s360 + $0x4c] sm:$0xf]
        %v384 = vld [vmem:[%s360 + $0x50] sm:$0xf]
        %v385 = vld [vmem:[%s360 + $0x54] sm:$0xf]
        %v386 = vld [vmem:[%s360 + $0x58] sm:$0xf]
        %v387 = vld [vmem:[%s360 + $0x5c] sm:$0xf]
        %v388 = vld [vmem:[%s360 + $0x60] sm:$0xf]
        %v389 = vld [vmem:[%s360 + $0x64] sm:$0xf]
        %v390 = vld [vmem:[%s360 + $0x68] sm:$0xf]
        %v391 = vld [vmem:[%s360 + $0x6c] sm:$0xf]
        %v392 = vld [vmem:[%s360 + $0x70] sm:$0xf]
        %v393 = vld [vmem:[%s360 + $0x74] sm:$0xf]
        %v394 = vld [vmem:[%s360 + $0x78] sm:$0xf]
        %v395 = vld [vmem:[%s360 + $0x7c] sm:$0xf]
        %v396 = vld [vmem:[%s360 + $0x80] sm:$0xf]
        %v397 = vld [vmem:[%s360 + $0x84] sm:$0xf]
        %v398 = vld [vmem:[%s360 + $0x88] sm:$0xf]
        %v399 = vld [vmem:[%s360 + $0x8c] sm:$0xf]
        %v400 = vld [vmem:[%s360 + $0x90] sm:$0xf]
        %v401 = vld [vmem:[%s360 + $0x94] sm:$0xf]
        %v402 = vld [vmem:[%s360 + $0x98] sm:$0xf]
        %v403 = vld [vmem:[%s360 + $0x9c] sm:$0xf]
        %v404 = vld [vmem:[%s360 + $0xa0] sm:$0xf]
        %v405 = vld [vmem:[%s360 + $0xa4] sm:$0xf]
        %v406 = vld [vmem:[%s360 + $0xa8] sm:$0xf]
        %v407 = vld [vmem:[%s360 + $0xac] sm:$0xf]
        %v408 = vld [vmem:[%s360 + $0xb0] sm:$0xf]
        %v409 = vld [vmem:[%s360 + $0xb4] sm:$0xf]
        %v410 = vld [vmem:[%s360 + $0xb8] sm:$0xf]
        %v411 = vld [vmem:[%s360 + $0xbc] sm:$0xf]
        %v412 = vld [vmem:[%s360 + $0xc0] sm:$0xf]
        %v413 = vld [vmem:[%s360 + $0xc4] sm:$0xf]
        %v414 = vld [vmem:[%s360 + $0xc8] sm:$0xf]
        %v415 = vld [vmem:[%s360 + $0xcc] sm:$0xf]
        %v416 = vld [vmem:[%s360 + $0xd0] sm:$0xf]
        %v417 = vld [vmem:[%s360 + $0xd4] sm:$0xf]
        %v418 = vld [vmem:[%s360 + $0xd8] sm:$0xf]
        %v419 = vld [vmem:[%s360 + $0xdc] sm:$0xf]
        %v420 = vld [vmem:[%s360 + $0xe0] sm:$0xf]
        %v421 = vld [vmem:[%s360 + $0xe4] sm:$0xf]
        %v422 = vld [vmem:[%s360 + $0xe8] sm:$0xf]
        %v423 = vld [vmem:[%s360 + $0xec] sm:$0xf]
        %v424 = vld [vmem:[%s360 + $0xf0] sm:$0xf]
        %v425 = vld [vmem:[%s360 + $0xf4] sm:$0xf]
        %v426 = vld [vmem:[%s360 + $0xf8] sm:$0xf]
        %v427 = vld [vmem:[%s360 + $0xfc] sm:$0xf]
        %v428 = vld [vmem:[%s1] sm:$0xf]
        %v429 = vld [vmem:[%s1 + $0x4] sm:$0xf]
        %v430 = vld [vmem:[%s1 + $0x8] sm:$0xf]
        %v431 = vld [vmem:[%s1 + $0xc] sm:$0xf]
        %v432 = vld [vmem:[%s1 + $0x10] sm:$0xf]
        %v433 = vld [vmem:[%s1 + $0x14] sm:$0xf]
        %v434 = vld [vmem:[%s1 + $0x18] sm:$0xf]
        %v435 = vld [vmem:[%s1 + $0x1c] sm:$0xf]
        %v436 = vld [vmem:[%s1 + $0x20] sm:$0xf]
        %v437 = vld [vmem:[%s1 + $0x24] sm:$0xf]
        %v438 = vld [vmem:[%s1 + $0x28] sm:$0xf]
        %v439 = vld [vmem:[%s1 + $0x2c] sm:$0xf]
        %v440 = vld [vmem:[%s1 + $0x30] sm:$0xf]
        %v441 = vld [vmem:[%s1 + $0x34] sm:$0xf]
        %v442 = vld [vmem:[%s1 + $0x38] sm:$0xf]
        %v443 = vld [vmem:[%s1 + $0x3c] sm:$0xf]
        %v444 = vld [vmem:[%s2] sm:$0xff]
        %v445 = vld [vmem:[%s2 + $0x8] sm:$0xff]
        %v446 = vld [vmem:[%s2 + $0x10] sm:$0xff]
        %v447 = vld [vmem:[%s2 + $0x18] sm:$0xff]
        %v448 = vld [vmem:[%s2 + $0x20] sm:$0xff]
        %v449 = vld [vmem:[%s2 + $0x28] sm:$0xff]
        %v450 = vld [vmem:[%s2 + $0x30] sm:$0xff]
        %v451 = vld [vmem:[%s2 + $0x38] sm:$0xff]
        %v452 = vld [vmem:[%s2 + $0x40] sm:$0xff]
        %v453 = vld [vmem:[%s2 + $0x48] sm:$0xff]
        %v454 = vld [vmem:[%s2 + $0x50] sm:$0xff]
        %v455 = vld [vmem:[%s2 + $0x58] sm:$0xff]
        %v456 = vld [vmem:[%s2 + $0x60] sm:$0xff]
        %v457 = vld [vmem:[%s2 + $0x68] sm:$0xff]
        %v458 = vld [vmem:[%s2 + $0x70] sm:$0xff]
        %v459 = vld [vmem:[%s2 + $0x78] sm:$0xff]
        %461 = vset.pattern.permute.xlu0 0
        %462 = vperm.xlu0 %461, %v444
        %v463 = vpop.permute.xlu0 %462
        %466 = vset.pattern.permute.xlu0 0
        %467 = vperm.xlu0 %466, %v445
        %v468 = vpop.permute.xlu0 %467
        %471 = vset.pattern.permute.xlu0 0
        %472 = vperm.xlu0 %471, %v446
        %v473 = vpop.permute.xlu0 %472
        %476 = vset.pattern.permute.xlu0 0
        %477 = vperm.xlu0 %476, %v447
        %v478 = vpop.permute.xlu0 %477
        %481 = vset.pattern.permute.xlu0 0
        %482 = vperm.xlu0 %481, %v448
        %v483 = vpop.permute.xlu0 %482
        %486 = vset.pattern.permute.xlu0 0
        %487 = vperm.xlu0 %486, %v449
        %v488 = vpop.permute.xlu0 %487
        %491 = vset.pattern.permute.xlu0 0
        %492 = vperm.xlu0 %491, %v450
        %v493 = vpop.permute.xlu0 %492
        %496 = vset.pattern.permute.xlu0 0
        %497 = vperm.xlu0 %496, %v451
        %v498 = vpop.permute.xlu0 %497
        %501 = vset.pattern.permute.xlu0 0
        %502 = vperm.xlu0 %501, %v452
        %v503 = vpop.permute.xlu0 %502
        %506 = vset.pattern.permute.xlu0 0
        %507 = vperm.xlu0 %506, %v453
        %v508 = vpop.permute.xlu0 %507
        %511 = vset.pattern.permute.xlu0 0
        %512 = vperm.xlu0 %511, %v454
        %v513 = vpop.permute.xlu0 %512
        %516 = vset.pattern.permute.xlu0 0
        %517 = vperm.xlu0 %516, %v455
        %v518 = vpop.permute.xlu0 %517
        %521 = vset.pattern.permute.xlu0 0
        %522 = vperm.xlu0 %521, %v456
        %v523 = vpop.permute.xlu0 %522
        %526 = vset.pattern.permute.xlu0 0
        %527 = vperm.xlu0 %526, %v457
        %v528 = vpop.permute.xlu0 %527
        %531 = vset.pattern.permute.xlu0 0
        %532 = vperm.xlu0 %531, %v458
        %v533 = vpop.permute.xlu0 %532
        %536 = vset.pattern.permute.xlu0 0
        %537 = vperm.xlu0 %536, %v459
        %v538 = vpop.permute.xlu0 %537
        %v556 = vunpack.c.l.b16 %v428
        %v557 = vunpack.c.l.b16 %v429
        %v558 = vunpack.c.l.b16 %v430
        %v559 = vunpack.c.l.b16 %v431
        %v560 = vunpack.c.l.b16 %v432
        %v561 = vunpack.c.l.b16 %v433
        %v562 = vunpack.c.l.b16 %v434
        %v563 = vunpack.c.l.b16 %v435
        %v564 = vunpack.c.l.b16 %v436
        %v565 = vunpack.c.l.b16 %v437
        %v566 = vunpack.c.l.b16 %v438
        %v567 = vunpack.c.l.b16 %v439
        %v568 = vunpack.c.l.b16 %v440
        %v569 = vunpack.c.l.b16 %v441
        %v570 = vunpack.c.l.b16 %v442
        %v571 = vunpack.c.l.b16 %v443
        %v572 = vpack.c.b16 %v557, %v556
        %v573 = vpack.c.b16 %v559, %v558
        %v574 = vpack.c.b16 %v561, %v560
        %v575 = vpack.c.b16 %v563, %v562
        %v576 = vpack.c.b16 %v565, %v564
        %v577 = vpack.c.b16 %v567, %v566
        %v578 = vpack.c.b16 %v569, %v568
        %v579 = vpack.c.b16 %v571, %v570
        %v644 = vunpack.c.l.b16 %v364
        %v645 = vunpack.c.l.b16 %v365
        %v646 = vunpack.c.l.b16 %v366
        %v647 = vunpack.c.l.b16 %v367
        %v648 = vunpack.c.l.b16 %v368
        %v649 = vunpack.c.l.b16 %v369
        %v650 = vunpack.c.l.b16 %v370
        %v651 = vunpack.c.l.b16 %v371
        %v652 = vunpack.c.l.b16 %v372
        %v653 = vunpack.c.l.b16 %v373
        %v654 = vunpack.c.l.b16 %v374
        %v655 = vunpack.c.l.b16 %v375
        %v656 = vunpack.c.l.b16 %v376
        %v657 = vunpack.c.l.b16 %v377
        %v658 = vunpack.c.l.b16 %v378
        %v659 = vunpack.c.l.b16 %v379
        %v660 = vunpack.c.l.b16 %v380
        %v661 = vunpack.c.l.b16 %v381
        %v662 = vunpack.c.l.b16 %v382
        %v663 = vunpack.c.l.b16 %v383
        %v664 = vunpack.c.l.b16 %v384
        %v665 = vunpack.c.l.b16 %v385
        %v666 = vunpack.c.l.b16 %v386
        %v667 = vunpack.c.l.b16 %v387
        %v668 = vunpack.c.l.b16 %v388
        %v669 = vunpack.c.l.b16 %v389
        %v670 = vunpack.c.l.b16 %v390
        %v671 = vunpack.c.l.b16 %v391
        %v672 = vunpack.c.l.b16 %v392
        %v673 = vunpack.c.l.b16 %v393
        %v674 = vunpack.c.l.b16 %v394
        %v675 = vunpack.c.l.b16 %v395
        %v676 = vunpack.c.l.b16 %v396
        %v677 = vunpack.c.l.b16 %v397
        %v678 = vunpack.c.l.b16 %v398
        %v679 = vunpack.c.l.b16 %v399
        %v680 = vunpack.c.l.b16 %v400
        %v681 = vunpack.c.l.b16 %v401
        %v682 = vunpack.c.l.b16 %v402
        %v683 = vunpack.c.l.b16 %v403
        %v684 = vunpack.c.l.b16 %v404
        %v685 = vunpack.c.l.b16 %v405
        %v686 = vunpack.c.l.b16 %v406
        %v687 = vunpack.c.l.b16 %v407
        %v688 = vunpack.c.l.b16 %v408
        %v689 = vunpack.c.l.b16 %v409
        %v690 = vunpack.c.l.b16 %v410
        %v691 = vunpack.c.l.b16 %v411
        %v692 = vunpack.c.l.b16 %v412
        %v693 = vunpack.c.l.b16 %v413
        %v694 = vunpack.c.l.b16 %v414
        %v695 = vunpack.c.l.b16 %v415
        %v696 = vunpack.c.l.b16 %v416
        %v697 = vunpack.c.l.b16 %v417
        %v698 = vunpack.c.l.b16 %v418
        %v699 = vunpack.c.l.b16 %v419
        %v700 = vunpack.c.l.b16 %v420
        %v701 = vunpack.c.l.b16 %v421
        %v702 = vunpack.c.l.b16 %v422
        %v703 = vunpack.c.l.b16 %v423
        %v704 = vunpack.c.l.b16 %v424
        %v705 = vunpack.c.l.b16 %v425
        %v706 = vunpack.c.l.b16 %v426
        %v707 = vunpack.c.l.b16 %v427
        %v708 = vpack.c.b16 %v645, %v644
        %v709 = vpack.c.b16 %v647, %v646
        %v710 = vpack.c.b16 %v649, %v648
        %v711 = vpack.c.b16 %v651, %v650
        %v712 = vpack.c.b16 %v653, %v652
        %v713 = vpack.c.b16 %v655, %v654
        %v714 = vpack.c.b16 %v657, %v656
        %v715 = vpack.c.b16 %v659, %v658
        %v716 = vpack.c.b16 %v661, %v660
        %v717 = vpack.c.b16 %v663, %v662
        %v718 = vpack.c.b16 %v665, %v664
        %v719 = vpack.c.b16 %v667, %v666
        %v720 = vpack.c.b16 %v669, %v668
        %v721 = vpack.c.b16 %v671, %v670
        %v722 = vpack.c.b16 %v673, %v672
        %v723 = vpack.c.b16 %v675, %v674
        %v724 = vpack.c.b16 %v677, %v676
        %v725 = vpack.c.b16 %v679, %v678
        %v726 = vpack.c.b16 %v681, %v680
        %v727 = vpack.c.b16 %v683, %v682
        %v728 = vpack.c.b16 %v685, %v684
        %v729 = vpack.c.b16 %v687, %v686
        %v730 = vpack.c.b16 %v689, %v688
        %v731 = vpack.c.b16 %v691, %v690
        %v732 = vpack.c.b16 %v693, %v692
        %v733 = vpack.c.b16 %v695, %v694
        %v734 = vpack.c.b16 %v697, %v696
        %v735 = vpack.c.b16 %v699, %v698
        %v736 = vpack.c.b16 %v701, %v700
        %v737 = vpack.c.b16 %v703, %v702
        %v738 = vpack.c.b16 %v705, %v704
        %v739 = vpack.c.b16 %v707, %v706
        %vm740 = vcmask 261120
        %v742 = vsel %vm740, %v572, 0
        %v745 = vsel %vm740, %v573, 0
        %v748 = vsel %vm740, %v574, 0
        %v751 = vsel %vm740, %v575, 0
        %v754 = vsel %vm740, %v576, 0
        %v757 = vsel %vm740, %v577, 0
        %v760 = vsel %vm740, %v578, 0
        %v763 = vsel %vm740, %v579, 0
        %v766 = vsel %vm740, %v708, 0
        %v769 = vsel %vm740, %v709, 0
        %v772 = vsel %vm740, %v710, 0
        %v775 = vsel %vm740, %v711, 0
        %v778 = vsel %vm740, %v712, 0
        %v781 = vsel %vm740, %v713, 0
        %v784 = vsel %vm740, %v714, 0
        %v787 = vsel %vm740, %v715, 0
        %v790 = vsel %vm740, %v716, 0
        %v793 = vsel %vm740, %v717, 0
        %v796 = vsel %vm740, %v718, 0
        %v799 = vsel %vm740, %v719, 0
        %v802 = vsel %vm740, %v720, 0
        %v805 = vsel %vm740, %v721, 0
        %v808 = vsel %vm740, %v722, 0
        %v811 = vsel %vm740, %v723, 0
        %v814 = vsel %vm740, %v724, 0
        %v817 = vsel %vm740, %v725, 0
        %v820 = vsel %vm740, %v726, 0
        %v823 = vsel %vm740, %v727, 0
        %v826 = vsel %vm740, %v728, 0
        %v829 = vsel %vm740, %v729, 0
        %v832 = vsel %vm740, %v730, 0
        %v835 = vsel %vm740, %v731, 0
        %v838 = vsel %vm740, %v732, 0
        %v841 = vsel %vm740, %v733, 0
        %v844 = vsel %vm740, %v734, 0
        %v847 = vsel %vm740, %v735, 0
        %v850 = vsel %vm740, %v736, 0
        %v853 = vsel %vm740, %v737, 0
        %v856 = vsel %vm740, %v738, 0
        %v859 = vsel %vm740, %v739, 0
        %861 = vmatprep.subr.bf16.mxu0 0
        %862 = vmatpush1.bf16.xpose.msra.mxu0 %v766
        %863 = vmatprep.subr.bf16.mxu0 0
        %864 = vmatpush1.bf16.xpose.msra.mxu0 %v769
        %865 = vmatprep.subr.bf16.mxu0 0
        %866 = vmatpush1.bf16.xpose.msra.mxu0 %v772
        %867 = vmatprep.subr.bf16.mxu0 0
        %868 = vmatpush1.bf16.xpose.msra.mxu0 %v775
        %869 = vmatprep.subr.bf16.mxu0 0
        %870 = vmatpush1.bf16.xpose.msra.mxu0 %v778
        %871 = vmatprep.subr.bf16.mxu0 0
        %872 = vmatpush1.bf16.xpose.msra.mxu0 %v781
        %873 = vmatprep.subr.bf16.mxu0 0
        %874 = vmatpush1.bf16.xpose.msra.mxu0 %v784
        %875 = vmatprep.subr.bf16.mxu0 0
        %876 = vmatpush1.bf16.xpose.msra.mxu0 %v787
        %877 = vmatprep.subr.bf16.mxu0 0
        %878 = vmatpush1.bf16.xpose.msra.mxu0 %v790
        %879 = vmatprep.subr.bf16.mxu0 0
        %880 = vmatpush1.bf16.xpose.msra.mxu0 %v793
        %881 = vmatprep.subr.bf16.mxu0 0
        %882 = vmatpush1.bf16.xpose.msra.mxu0 %v796
        %883 = vmatprep.subr.bf16.mxu0 0
        %884 = vmatpush1.bf16.xpose.msra.mxu0 %v799
        %885 = vmatprep.subr.bf16.mxu0 0
        %886 = vmatpush1.bf16.xpose.msra.mxu0 %v802
        %887 = vmatprep.subr.bf16.mxu0 0
        %888 = vmatpush1.bf16.xpose.msra.mxu0 %v805
        %889 = vmatprep.subr.bf16.mxu0 0
        %890 = vmatpush1.bf16.xpose.msra.mxu0 %v808
        %891 = vmatprep.subr.bf16.mxu0 0
        %892 = vmatpush1.bf16.xpose.msra.mxu0 %v811
        %893 = vmatprep.mubr.bf16.mxu0 0
        %894 = vmatmul.mubr.bf16.gmra.mrb[0].mxu0 %v742
        %v895 = vpop.f32.mrb[0].mxu0
        %v896 = vadd.f32 %v463, %v895
        %v897 = vpop.f32.mrb[0].mxu0
        %v898 = vadd.f32 %v463, %v897
        %v899 = vpop.f32.mrb[0].mxu0
        %v900 = vadd.f32 %v468, %v899
        %v901 = vpop.f32.mrb[0].mxu0
        %v902 = vadd.f32 %v468, %v901
        %903 = vmatprep.mubr.bf16.mxu0 0
        %904 = vmatmul.mubr.bf16.gmra.mrb[0].mxu0 %v745
        %v905 = vpop.f32.mrb[0].mxu0
        %v906 = vadd.f32 %v473, %v905
        %v907 = vpop.f32.mrb[0].mxu0
        %v908 = vadd.f32 %v473, %v907
        %v909 = vpop.f32.mrb[0].mxu0
        %v910 = vadd.f32 %v478, %v909
        %v911 = vpop.f32.mrb[0].mxu0
        %v912 = vadd.f32 %v478, %v911
        %913 = vmatprep.mubr.bf16.mxu0 0
        %914 = vmatmul.mubr.bf16.gmra.mrb[0].mxu0 %v748
        %v915 = vpop.f32.mrb[0].mxu0
        %v916 = vadd.f32 %v483, %v915
        %v917 = vpop.f32.mrb[0].mxu0
        %v918 = vadd.f32 %v483, %v917
        %v919 = vpop.f32.mrb[0].mxu0
        %v920 = vadd.f32 %v488, %v919
        %v921 = vpop.f32.mrb[0].mxu0
        %v922 = vadd.f32 %v488, %v921
        %923 = vmatprep.mubr.bf16.mxu0 0
        %924 = vmatmul.mubr.bf16.gmra.mrb[0].mxu0 %v751
        %v925 = vpop.f32.mrb[0].mxu0
        %v926 = vadd.f32 %v493, %v925
        %v927 = vpop.f32.mrb[0].mxu0
        %v928 = vadd.f32 %v493, %v927
        %v929 = vpop.f32.mrb[0].mxu0
        %v930 = vadd.f32 %v498, %v929
        %v931 = vpop.f32.mrb[0].mxu0
        %v932 = vadd.f32 %v498, %v931
        %933 = vmatprep.mubr.bf16.mxu0 0
        %934 = vmatmul.mubr.bf16.gmra.mrb[0].mxu0 %v754
        %v935 = vpop.f32.mrb[0].mxu0
        %v936 = vadd.f32 %v503, %v935
        %v937 = vpop.f32.mrb[0].mxu0
        %v938 = vadd.f32 %v503, %v937
        %v939 = vpop.f32.mrb[0].mxu0
        %v940 = vadd.f32 %v508, %v939
        %v941 = vpop.f32.mrb[0].mxu0
        %v942 = vadd.f32 %v508, %v941
        %943 = vmatprep.mubr.bf16.mxu0 0
        %944 = vmatmul.mubr.bf16.gmra.mrb[0].mxu0 %v757
        %v945 = vpop.f32.mrb[0].mxu0
        %v946 = vadd.f32 %v513, %v945
        %v947 = vpop.f32.mrb[0].mxu0
        %v948 = vadd.f32 %v513, %v947
        %v949 = vpop.f32.mrb[0].mxu0
        %v950 = vadd.f32 %v518, %v949
        %v951 = vpop.f32.mrb[0].mxu0
        %v952 = vadd.f32 %v518, %v951
        %953 = vmatprep.mubr.bf16.mxu0 0
        %954 = vmatmul.mubr.bf16.gmra.mrb[0].mxu0 %v760
        %v955 = vpop.f32.mrb[0].mxu0
        %v956 = vadd.f32 %v523, %v955
        %v957 = vpop.f32.mrb[0].mxu0
        %v958 = vadd.f32 %v523, %v957
        %v959 = vpop.f32.mrb[0].mxu0
        %v960 = vadd.f32 %v528, %v959
        %v961 = vpop.f32.mrb[0].mxu0
        %v962 = vadd.f32 %v528, %v961
        %963 = vmatprep.mubr.bf16.mxu0 0
        %964 = vmatmul.mubr.bf16.gmra.mrb[0].mxu0 %v763
        %v965 = vpop.f32.mrb[0].mxu0
        %v966 = vadd.f32 %v533, %v965
        %v967 = vpop.f32.mrb[0].mxu0
        %v968 = vadd.f32 %v533, %v967
        %v969 = vpop.f32.mrb[0].mxu0
        %v970 = vadd.f32 %v538, %v969
        %v971 = vpop.f32.mrb[0].mxu0
        %v972 = vadd.f32 %v538, %v971
        %973 = vdwg.mxu0
        %974 = vmatprep.subr.bf16.mxu0 0
        %975 = vmatpush1.bf16.xpose.msra.mxu0 %v814
        %976 = vmatprep.subr.bf16.mxu0 0
        %977 = vmatpush1.bf16.xpose.msra.mxu0 %v817
        %978 = vmatprep.subr.bf16.mxu0 0
        %979 = vmatpush1.bf16.xpose.msra.mxu0 %v820
        %980 = vmatprep.subr.bf16.mxu0 0
        %981 = vmatpush1.bf16.xpose.msra.mxu0 %v823
        %982 = vmatprep.subr.bf16.mxu0 0
        %983 = vmatpush1.bf16.xpose.msra.mxu0 %v826
        %984 = vmatprep.subr.bf16.mxu0 0
        %985 = vmatpush1.bf16.xpose.msra.mxu0 %v829
        %986 = vmatprep.subr.bf16.mxu0 0
        %987 = vmatpush1.bf16.xpose.msra.mxu0 %v832
        %988 = vmatprep.subr.bf16.mxu0 0
        %989 = vmatpush1.bf16.xpose.msra.mxu0 %v835
        %990 = vmatprep.subr.bf16.mxu0 0
        %991 = vmatpush1.bf16.xpose.msra.mxu0 %v838
        %992 = vmatprep.subr.bf16.mxu0 0
        %993 = vmatpush1.bf16.xpose.msra.mxu0 %v841
        %994 = vmatprep.subr.bf16.mxu0 0
        %995 = vmatpush1.bf16.xpose.msra.mxu0 %v844
        %996 = vmatprep.subr.bf16.mxu0 0
        %997 = vmatpush1.bf16.xpose.msra.mxu0 %v847
        %998 = vmatprep.subr.bf16.mxu0 0
        %999 = vmatpush1.bf16.xpose.msra.mxu0 %v850
        %1000 = vmatprep.subr.bf16.mxu0 0
        %1001 = vmatpush1.bf16.xpose.msra.mxu0 %v853
        %1002 = vmatprep.subr.bf16.mxu0 0
        %1003 = vmatpush1.bf16.xpose.msra.mxu0 %v856
        %1004 = vmatprep.subr.bf16.mxu0 0
        %1005 = vmatpush1.bf16.xpose.msra.mxu0 %v859
        %1006 = vmatprep.mubr.bf16.mxu0 0
        %1007 = vmatmul.mubr.bf16.gmra.mrb[0].mxu0 %v742
        %v1008 = vpop.f32.mrb[0].mxu0
        %v1009 = vadd.f32 %v463, %v1008
        %v1010 = vpop.f32.mrb[0].mxu0
        %v1011 = vadd.f32 %v463, %v1010
        %v1012 = vpop.f32.mrb[0].mxu0
        %v1013 = vadd.f32 %v468, %v1012
        %v1014 = vpop.f32.mrb[0].mxu0
        %v1015 = vadd.f32 %v468, %v1014
        %1016 = vmatprep.mubr.bf16.mxu0 0
        %1017 = vmatmul.mubr.bf16.gmra.mrb[0].mxu0 %v745
        %v1018 = vpop.f32.mrb[0].mxu0
        %v1019 = vadd.f32 %v473, %v1018
        %v1020 = vpop.f32.mrb[0].mxu0
        %v1021 = vadd.f32 %v473, %v1020
        %v1022 = vpop.f32.mrb[0].mxu0
        %v1023 = vadd.f32 %v478, %v1022
        %v1024 = vpop.f32.mrb[0].mxu0
        %v1025 = vadd.f32 %v478, %v1024
        %1026 = vmatprep.mubr.bf16.mxu0 0
        %1027 = vmatmul.mubr.bf16.gmra.mrb[0].mxu0 %v748
        %v1028 = vpop.f32.mrb[0].mxu0
        %v1029 = vadd.f32 %v483, %v1028
        %v1030 = vpop.f32.mrb[0].mxu0
        %v1031 = vadd.f32 %v483, %v1030
        %v1032 = vpop.f32.mrb[0].mxu0
        %v1033 = vadd.f32 %v488, %v1032
        %v1034 = vpop.f32.mrb[0].mxu0
        %v1035 = vadd.f32 %v488, %v1034
        %1036 = vmatprep.mubr.bf16.mxu0 0
        %1037 = vmatmul.mubr.bf16.gmra.mrb[0].mxu0 %v751
        %v1038 = vpop.f32.mrb[0].mxu0
        %v1039 = vadd.f32 %v493, %v1038
        %v1040 = vpop.f32.mrb[0].mxu0
        %v1041 = vadd.f32 %v493, %v1040
        %v1042 = vpop.f32.mrb[0].mxu0
        %v1043 = vadd.f32 %v498, %v1042
        %v1044 = vpop.f32.mrb[0].mxu0
        %v1045 = vadd.f32 %v498, %v1044
        %1046 = vmatprep.mubr.bf16.mxu0 0
        %1047 = vmatmul.mubr.bf16.gmra.mrb[0].mxu0 %v754
        %v1048 = vpop.f32.mrb[0].mxu0
        %v1049 = vadd.f32 %v503, %v1048
        %v1050 = vpop.f32.mrb[0].mxu0
        %v1051 = vadd.f32 %v503, %v1050
        %v1052 = vpop.f32.mrb[0].mxu0
        %v1053 = vadd.f32 %v508, %v1052
        %v1054 = vpop.f32.mrb[0].mxu0
        %v1055 = vadd.f32 %v508, %v1054
        %1056 = vmatprep.mubr.bf16.mxu0 0
        %1057 = vmatmul.mubr.bf16.gmra.mrb[0].mxu0 %v757
        %v1058 = vpop.f32.mrb[0].mxu0
        %v1059 = vadd.f32 %v513, %v1058
        %v1060 = vpop.f32.mrb[0].mxu0
        %v1061 = vadd.f32 %v513, %v1060
        %v1062 = vpop.f32.mrb[0].mxu0
        %v1063 = vadd.f32 %v518, %v1062
        %v1064 = vpop.f32.mrb[0].mxu0
        %v1065 = vadd.f32 %v518, %v1064
        %1066 = vmatprep.mubr.bf16.mxu0 0
        %1067 = vmatmul.mubr.bf16.gmra.mrb[0].mxu0 %v760
        %v1068 = vpop.f32.mrb[0].mxu0
        %v1069 = vadd.f32 %v523, %v1068
        %v1070 = vpop.f32.mrb[0].mxu0
        %v1071 = vadd.f32 %v523, %v1070
        %v1072 = vpop.f32.mrb[0].mxu0
        %v1073 = vadd.f32 %v528, %v1072
        %v1074 = vpop.f32.mrb[0].mxu0
        %v1075 = vadd.f32 %v528, %v1074
        %1076 = vmatprep.mubr.bf16.mxu0 0
        %1077 = vmatmul.mubr.bf16.gmra.mrb[0].mxu0 %v763
        %v1078 = vpop.f32.mrb[0].mxu0
        %v1079 = vadd.f32 %v533, %v1078
        %v1080 = vpop.f32.mrb[0].mxu0
        %v1081 = vadd.f32 %v533, %v1080
        %v1082 = vpop.f32.mrb[0].mxu0
        %v1083 = vadd.f32 %v538, %v1082
        %v1084 = vpop.f32.mrb[0].mxu0
        %v1085 = vadd.f32 %v538, %v1084
        %1086 = vdwg.mxu0
        %v1087 = vmul.f32 %v896, %v916
        %v1088 = vmul.f32 %v898, %v918
        %v1089 = vmul.f32 %v1009, %v1029
        %v1090 = vmul.f32 %v1011, %v1031
        %v1091 = vmul.f32 %v900, %v920
        %v1092 = vmul.f32 %v902, %v922
        %v1093 = vmul.f32 %v1013, %v1033
        %v1094 = vmul.f32 %v1015, %v1035
        %v1095 = vmul.f32 %v906, %v926
        %v1096 = vmul.f32 %v908, %v928
        %v1097 = vmul.f32 %v1019, %v1039
        %v1098 = vmul.f32 %v1021, %v1041
        %v1099 = vmul.f32 %v910, %v930
        %v1100 = vmul.f32 %v912, %v932
        %v1101 = vmul.f32 %v1023, %v1043
        %v1102 = vmul.f32 %v1025, %v1045
        %v1103 = vmax.f32 %v936, 0.0
        %v1104 = vmax.f32 %v938, 0.0
        %v1105 = vmax.f32 %v1049, 0.0
        %v1106 = vmax.f32 %v1051, 0.0
        %v1107 = vmax.f32 %v940, 0.0
        %v1108 = vmax.f32 %v942, 0.0
        %v1109 = vmax.f32 %v1053, 0.0
        %v1110 = vmax.f32 %v1055, 0.0
        %v1111 = vmax.f32 %v946, 0.0
        %v1112 = vmax.f32 %v948, 0.0
        %v1113 = vmax.f32 %v1059, 0.0
        %v1114 = vmax.f32 %v1061, 0.0
        %v1115 = vmax.f32 %v950, 0.0
        %v1116 = vmax.f32 %v952, 0.0
        %v1117 = vmax.f32 %v1063, 0.0
        %v1118 = vmax.f32 %v1065, 0.0
        %v1119 = vmax.f32 %v956, 0.0
        %v1120 = vmax.f32 %v958, 0.0
        %v1121 = vmax.f32 %v1069, 0.0
        %v1122 = vmax.f32 %v1071, 0.0
        %v1123 = vmax.f32 %v960, 0.0
        %v1124 = vmax.f32 %v962, 0.0
        %v1125 = vmax.f32 %v1073, 0.0
        %v1126 = vmax.f32 %v1075, 0.0
        %v1127 = vmax.f32 %v966, 0.0
        %v1128 = vmax.f32 %v968, 0.0
        %v1129 = vmax.f32 %v1079, 0.0
        %v1130 = vmax.f32 %v1081, 0.0
        %v1131 = vmax.f32 %v970, 0.0
        %v1132 = vmax.f32 %v972, 0.0
        %v1133 = vmax.f32 %v1083, 0.0
        %v1134 = vmax.f32 %v1085, 0.0
        %v1135 = vld [vmem:[%s3] sm:$0xf]
        %v1136 = vld [vmem:[%s3 + $0x4] sm:$0xf]
        %v1137 = vld [vmem:[%s3 + $0x8] sm:$0xf]
        %v1138 = vld [vmem:[%s3 + $0xc] sm:$0xf]
        %v1139 = vpack.c.bf16 %v1091, %v1087
        %v1140 = vpack.c.bf16 %v1092, %v1088
        %v1141 = vpack.c.bf16 %v1093, %v1089
        %v1142 = vpack.c.bf16 %v1094, %v1090
        %v1143 = vpack.c.bf16 %v1099, %v1095
        %v1144 = vpack.c.bf16 %v1100, %v1096
        %v1145 = vpack.c.bf16 %v1101, %v1097
        %v1146 = vpack.c.bf16 %v1102, %v1098
        %v1147 = vld [vmem:[%s4] sm:$0xff]
        %v1148 = vld [vmem:[%s4 + $0x8] sm:$0xff]
        %v1149 = vld [vmem:[%s4 + $0x10] sm:$0xff]
        %v1150 = vld [vmem:[%s4 + $0x18] sm:$0xff]
        %1152 = vset.pattern.permute.xlu0 0
        %1153 = vperm.xlu0 %1152, %v1147
        %v1154 = vpop.permute.xlu0 %1153
        %1157 = vset.pattern.permute.xlu0 0
        %1158 = vperm.xlu0 %1157, %v1148
        %v1159 = vpop.permute.xlu0 %1158
        %1162 = vset.pattern.permute.xlu0 0
        %1163 = vperm.xlu0 %1162, %v1149
        %v1164 = vpop.permute.xlu0 %1163
        %1167 = vset.pattern.permute.xlu0 0
        %1168 = vperm.xlu0 %1167, %v1150
        %v1169 = vpop.permute.xlu0 %1168
        %v1175 = vunpack.c.l.b16 %v1135
        %v1176 = vunpack.c.l.b16 %v1136
        %v1177 = vunpack.c.l.b16 %v1137
        %v1178 = vunpack.c.l.b16 %v1138
        %v1179 = vpack.c.b16 %v1176, %v1175
        %v1180 = vpack.c.b16 %v1178, %v1177
        %v1182 = vsel %vm740, %v1179, 0
        %v1185 = vsel %vm740, %v1180, 0
        %1187 = vmatprep.subr.bf16.mxu0 %v1140
        %1188 = vmatpush1.bf16.msra.mxu0 %v1139
        %1189 = vmatprep.subr.bf16.mxu0 %v1144
        %1190 = vmatpush1.bf16.msra.mxu0 %v1143
        %1191 = vmatprep.subr.bf16.mxu0 0
        %1192 = vmatpush1.bf16.msra.mxu0 0
        %1193 = vmatprep.subr.bf16.mxu0 0
        %1194 = vmatpush1.bf16.msra.mxu0 0
        %1195 = vmatprep.subr.bf16.mxu0 0
        %1196 = vmatpush1.bf16.msra.mxu0 0
        %1197 = vmatprep.subr.bf16.mxu0 0
        %1198 = vmatpush1.bf16.msra.mxu0 0
        %1199 = vmatprep.subr.bf16.mxu0 0
        %1200 = vmatpush1.bf16.msra.mxu0 0
        %1201 = vmatprep.subr.bf16.mxu0 0
        %1202 = vmatpush1.bf16.msra.mxu0 0
        %1203 = vmatprep.subr.bf16.mxu0 0
        %1204 = vmatpush1.bf16.msra.mxu0 0
        %1205 = vmatprep.subr.bf16.mxu0 0
        %1206 = vmatpush1.bf16.msra.mxu0 0
        %1207 = vmatprep.subr.bf16.mxu0 0
        %1208 = vmatpush1.bf16.msra.mxu0 0
        %1209 = vmatprep.subr.bf16.mxu0 0
        %1210 = vmatpush1.bf16.msra.mxu0 0
        %1211 = vmatprep.subr.bf16.mxu0 0
        %1212 = vmatpush1.bf16.msra.mxu0 0
        %1213 = vmatprep.subr.bf16.mxu0 0
        %1214 = vmatpush1.bf16.msra.mxu0 0
        %1215 = vmatprep.subr.bf16.mxu0 0
        %1216 = vmatpush1.bf16.msra.mxu0 0
        %1217 = vmatprep.subr.bf16.mxu0 0
        %1218 = vmatpush1.bf16.msra.mxu0 0
        %1219 = vmatprep.mubr.bf16.mxu0 0
        %1220 = vmatmul.mubr.bf16.gmra.mrb[0].mxu0 %v1182
        %v1221 = vpop.f32.mrb[0].mxu0
        %v1222 = vadd.f32 %v1154, %v1221
        %v1223 = vpop.f32.mrb[0].mxu0
        %v1224 = vadd.f32 %v1154, %v1223
        %v1225 = vpop.f32.mrb[0].mxu0
        %v1226 = vadd.f32 %v1159, %v1225
        %v1227 = vpop.f32.mrb[0].mxu0
        %v1228 = vadd.f32 %v1159, %v1227
        %1229 = vmatprep.mubr.bf16.mxu0 0
        %1230 = vmatmul.mubr.bf16.gmra.mrb[0].mxu0 %v1185
        %v1231 = vpop.f32.mrb[0].mxu0
        %v1232 = vadd.f32 %v1164, %v1231
        %v1233 = vpop.f32.mrb[0].mxu0
        %v1234 = vadd.f32 %v1164, %v1233
        %v1235 = vpop.f32.mrb[0].mxu0
        %v1236 = vadd.f32 %v1169, %v1235
        %v1237 = vpop.f32.mrb[0].mxu0
        %v1238 = vadd.f32 %v1169, %v1237
        %1239 = vdwg.mxu0
        %1240 = vmatprep.subr.bf16.mxu0 %v1142
        %1241 = vmatpush1.bf16.msra.mxu0 %v1141
        %1242 = vmatprep.subr.bf16.mxu0 %v1146
        %1243 = vmatpush1.bf16.msra.mxu0 %v1145
        %1244 = vmatprep.subr.bf16.mxu0 0
        %1245 = vmatpush1.bf16.msra.mxu0 0
        %1246 = vmatprep.subr.bf16.mxu0 0
        %1247 = vmatpush1.bf16.msra.mxu0 0
        %1248 = vmatprep.subr.bf16.mxu0 0
        %1249 = vmatpush1.bf16.msra.mxu0 0
        %1250 = vmatprep.subr.bf16.mxu0 0
        %1251 = vmatpush1.bf16.msra.mxu0 0
        %1252 = vmatprep.subr.bf16.mxu0 0
        %1253 = vmatpush1.bf16.msra.mxu0 0
        %1254 = vmatprep.subr.bf16.mxu0 0
        %1255 = vmatpush1.bf16.msra.mxu0 0
        %1256 = vmatprep.subr.bf16.mxu0 0
        %1257 = vmatpush1.bf16.msra.mxu0 0
        %1258 = vmatprep.subr.bf16.mxu0 0
        %1259 = vmatpush1.bf16.msra.mxu0 0
        %1260 = vmatprep.subr.bf16.mxu0 0
        %1261 = vmatpush1.bf16.msra.mxu0 0
        %1262 = vmatprep.subr.bf16.mxu0 0
        %1263 = vmatpush1.bf16.msra.mxu0 0
        %1264 = vmatprep.subr.bf16.mxu0 0
        %1265 = vmatpush1.bf16.msra.mxu0 0
        %1266 = vmatprep.subr.bf16.mxu0 0
        %1267 = vmatpush1.bf16.msra.mxu0 0
        %1268 = vmatprep.subr.bf16.mxu0 0
        %1269 = vmatpush1.bf16.msra.mxu0 0
        %1270 = vmatprep.subr.bf16.mxu0 0
        %1271 = vmatpush1.bf16.msra.mxu0 0
        %1272 = vmatprep.mubr.bf16.mxu0 0
        %1273 = vmatmul.mubr.bf16.gmra.mrb[0].mxu0 %v1182
        %v1274 = vpop.f32.mrb[0].mxu0
        %v1275 = vadd.f32 %v1154, %v1274
        %v1276 = vpop.f32.mrb[0].mxu0
        %v1277 = vadd.f32 %v1154, %v1276
        %v1278 = vpop.f32.mrb[0].mxu0
        %v1279 = vadd.f32 %v1159, %v1278
        %v1280 = vpop.f32.mrb[0].mxu0
        %v1281 = vadd.f32 %v1159, %v1280
        %1282 = vmatprep.mubr.bf16.mxu0 0
        %1283 = vmatmul.mubr.bf16.gmra.mrb[0].mxu0 %v1185
        %v1284 = vpop.f32.mrb[0].mxu0
        %v1285 = vadd.f32 %v1164, %v1284
        %v1286 = vpop.f32.mrb[0].mxu0
        %v1287 = vadd.f32 %v1164, %v1286
        %v1288 = vpop.f32.mrb[0].mxu0
        %v1289 = vadd.f32 %v1169, %v1288
        %v1290 = vpop.f32.mrb[0].mxu0
        %v1291 = vadd.f32 %v1169, %v1290
        %1292 = vdwg.mxu0
        %v1293 = vmul.f32 %v896, %v1222
        %v1294 = vmul.f32 %v898, %v1224
        %v1295 = vmul.f32 %v1009, %v1275
        %v1296 = vmul.f32 %v1011, %v1277
        %v1297 = vmul.f32 %v900, %v1226
        %v1298 = vmul.f32 %v902, %v1228
        %v1299 = vmul.f32 %v1013, %v1279
        %v1300 = vmul.f32 %v1015, %v1281
        %v1301 = vmul.f32 %v906, %v1232
        %v1302 = vmul.f32 %v908, %v1234
        %v1303 = vmul.f32 %v1019, %v1285
        %v1304 = vmul.f32 %v1021, %v1287
        %v1305 = vmul.f32 %v910, %v1236
        %v1306 = vmul.f32 %v912, %v1238
        %v1307 = vmul.f32 %v1023, %v1289
        %v1308 = vmul.f32 %v1025, %v1291
        %v1309 = vadd.f32 %v1293, %v1087
        %v1310 = vadd.f32 %v1294, %v1088
        %v1311 = vadd.f32 %v1295, %v1089
        %v1312 = vadd.f32 %v1296, %v1090
        %v1313 = vadd.f32 %v1297, %v1091
        %v1314 = vadd.f32 %v1298, %v1092
        %v1315 = vadd.f32 %v1299, %v1093
        %v1316 = vadd.f32 %v1300, %v1094
        %v1317 = vadd.f32 %v1301, %v1095
        %v1318 = vadd.f32 %v1302, %v1096
        %v1319 = vadd.f32 %v1303, %v1097
        %v1320 = vadd.f32 %v1304, %v1098
        %v1321 = vadd.f32 %v1305, %v1099
        %v1322 = vadd.f32 %v1306, %v1100
        %v1323 = vadd.f32 %v1307, %v1101
        %v1324 = vadd.f32 %v1308, %v1102
        %s1325 = scalar_lea.vmem %s3, 16
        %v1326 = vld [vmem:[%s1325] sm:$0xf]
        %v1327 = vld [vmem:[%s1325 + $0x4] sm:$0xf]
        %v1328 = vld [vmem:[%s1325 + $0x8] sm:$0xf]
        %v1329 = vld [vmem:[%s1325 + $0xc] sm:$0xf]
        %v1330 = vpack.c.bf16 %v1313, %v1309
        %v1331 = vpack.c.bf16 %v1314, %v1310
        %v1332 = vpack.c.bf16 %v1315, %v1311
        %v1333 = vpack.c.bf16 %v1316, %v1312
        %v1334 = vpack.c.bf16 %v1321, %v1317
        %v1335 = vpack.c.bf16 %v1322, %v1318
        %v1336 = vpack.c.bf16 %v1323, %v1319
        %v1337 = vpack.c.bf16 %v1324, %v1320
        %s1338 = scalar_lea.vmem %s4, 32
        %v1339 = vld [vmem:[%s1338] sm:$0xff]
        %v1340 = vld [vmem:[%s1338 + $0x8] sm:$0xff]
        %v1341 = vld [vmem:[%s1338 + $0x10] sm:$0xff]
        %v1342 = vld [vmem:[%s1338 + $0x18] sm:$0xff]
        %1344 = vset.pattern.permute.xlu0 0
        %1345 = vperm.xlu0 %1344, %v1339
        %v1346 = vpop.permute.xlu0 %1345
        %1349 = vset.pattern.permute.xlu0 0
        %1350 = vperm.xlu0 %1349, %v1340
        %v1351 = vpop.permute.xlu0 %1350
        %1354 = vset.pattern.permute.xlu0 0
        %1355 = vperm.xlu0 %1354, %v1341
        %v1356 = vpop.permute.xlu0 %1355
        %1359 = vset.pattern.permute.xlu0 0
        %1360 = vperm.xlu0 %1359, %v1342
        %v1361 = vpop.permute.xlu0 %1360
        %v1367 = vunpack.c.l.b16 %v1326
        %v1368 = vunpack.c.l.b16 %v1327
        %v1369 = vunpack.c.l.b16 %v1328
        %v1370 = vunpack.c.l.b16 %v1329
        %v1371 = vpack.c.b16 %v1368, %v1367
        %v1372 = vpack.c.b16 %v1370, %v1369
        %v1374 = vsel %vm740, %v1371, 0
        %v1377 = vsel %vm740, %v1372, 0
        %1379 = vmatprep.subr.bf16.mxu0 %v1331
        %1380 = vmatpush1.bf16.msra.mxu0 %v1330
        %1381 = vmatprep.subr.bf16.mxu0 %v1335
        %1382 = vmatpush1.bf16.msra.mxu0 %v1334
        %1383 = vmatprep.subr.bf16.mxu0 0
        %1384 = vmatpush1.bf16.msra.mxu0 0
        %1385 = vmatprep.subr.bf16.mxu0 0
        %1386 = vmatpush1.bf16.msra.mxu0 0
        %1387 = vmatprep.subr.bf16.mxu0 0
        %1388 = vmatpush1.bf16.msra.mxu0 0
        %1389 = vmatprep.subr.bf16.mxu0 0
        %1390 = vmatpush1.bf16.msra.mxu0 0
        %1391 = vmatprep.subr.bf16.mxu0 0
        %1392 = vmatpush1.bf16.msra.mxu0 0
        %1393 = vmatprep.subr.bf16.mxu0 0
        %1394 = vmatpush1.bf16.msra.mxu0 0
        %1395 = vmatprep.subr.bf16.mxu0 0
        %1396 = vmatpush1.bf16.msra.mxu0 0
        %1397 = vmatprep.subr.bf16.mxu0 0
        %1398 = vmatpush1.bf16.msra.mxu0 0
        %1399 = vmatprep.subr.bf16.mxu0 0
        %1400 = vmatpush1.bf16.msra.mxu0 0
        %1401 = vmatprep.subr.bf16.mxu0 0
        %1402 = vmatpush1.bf16.msra.mxu0 0
        %1403 = vmatprep.subr.bf16.mxu0 0
        %1404 = vmatpush1.bf16.msra.mxu0 0
        %1405 = vmatprep.subr.bf16.mxu0 0
        %1406 = vmatpush1.bf16.msra.mxu0 0
        %1407 = vmatprep.subr.bf16.mxu0 0
        %1408 = vmatpush1.bf16.msra.mxu0 0
        %1409 = vmatprep.subr.bf16.mxu0 0
        %1410 = vmatpush1.bf16.msra.mxu0 0
        %1411 = vmatprep.mubr.bf16.mxu0 0
        %1412 = vmatmul.mubr.bf16.gmra.mrb[0].mxu0 %v1374
        %v1413 = vpop.f32.mrb[0].mxu0
        %v1414 = vadd.f32 %v1346, %v1413
        %v1415 = vpop.f32.mrb[0].mxu0
        %v1416 = vadd.f32 %v1346, %v1415
        %v1417 = vpop.f32.mrb[0].mxu0
        %v1418 = vadd.f32 %v1351, %v1417
        %v1419 = vpop.f32.mrb[0].mxu0
        %v1420 = vadd.f32 %v1351, %v1419
        %1421 = vmatprep.mubr.bf16.mxu0 0
        %1422 = vmatmul.mubr.bf16.gmra.mrb[0].mxu0 %v1377
        %v1423 = vpop.f32.mrb[0].mxu0
        %v1424 = vadd.f32 %v1356, %v1423
        %v1425 = vpop.f32.mrb[0].mxu0
        %v1426 = vadd.f32 %v1356, %v1425
        %v1427 = vpop.f32.mrb[0].mxu0
        %v1428 = vadd.f32 %v1361, %v1427
        %v1429 = vpop.f32.mrb[0].mxu0
        %v1430 = vadd.f32 %v1361, %v1429
        %1431 = vdwg.mxu0
        %1432 = vmatprep.subr.bf16.mxu0 %v1333
        %1433 = vmatpush1.bf16.msra.mxu0 %v1332
        %1434 = vmatprep.subr.bf16.mxu0 %v1337
        %1435 = vmatpush1.bf16.msra.mxu0 %v1336
        %1436 = vmatprep.subr.bf16.mxu0 0
        %1437 = vmatpush1.bf16.msra.mxu0 0
        %1438 = vmatprep.subr.bf16.mxu0 0
        %1439 = vmatpush1.bf16.msra.mxu0 0
        %1440 = vmatprep.subr.bf16.mxu0 0
        %1441 = vmatpush1.bf16.msra.mxu0 0
        %1442 = vmatprep.subr.bf16.mxu0 0
        %1443 = vmatpush1.bf16.msra.mxu0 0
        %1444 = vmatprep.subr.bf16.mxu0 0
        %1445 = vmatpush1.bf16.msra.mxu0 0
        %1446 = vmatprep.subr.bf16.mxu0 0
        %1447 = vmatpush1.bf16.msra.mxu0 0
        %1448 = vmatprep.subr.bf16.mxu0 0
        %1449 = vmatpush1.bf16.msra.mxu0 0
        %1450 = vmatprep.subr.bf16.mxu0 0
        %1451 = vmatpush1.bf16.msra.mxu0 0
        %1452 = vmatprep.subr.bf16.mxu0 0
        %1453 = vmatpush1.bf16.msra.mxu0 0
        %1454 = vmatprep.subr.bf16.mxu0 0
        %1455 = vmatpush1.bf16.msra.mxu0 0
        %1456 = vmatprep.subr.bf16.mxu0 0
        %1457 = vmatpush1.bf16.msra.mxu0 0
        %1458 = vmatprep.subr.bf16.mxu0 0
        %1459 = vmatpush1.bf16.msra.mxu0 0
        %1460 = vmatprep.subr.bf16.mxu0 0
        %1461 = vmatpush1.bf16.msra.mxu0 0
        %1462 = vmatprep.subr.bf16.mxu0 0
        %1463 = vmatpush1.bf16.msra.mxu0 0
        %1464 = vmatprep.mubr.bf16.mxu0 0
        %1465 = vmatmul.mubr.bf16.gmra.mrb[0].mxu0 %v1374
        %v1466 = vpop.f32.mrb[0].mxu0
        %v1467 = vadd.f32 %v1346, %v1466
        %v1468 = vpop.f32.mrb[0].mxu0
        %v1469 = vadd.f32 %v1346, %v1468
        %v1470 = vpop.f32.mrb[0].mxu0
        %v1471 = vadd.f32 %v1351, %v1470
        %v1472 = vpop.f32.mrb[0].mxu0
        %v1473 = vadd.f32 %v1351, %v1472
        %1474 = vmatprep.mubr.bf16.mxu0 0
        %1475 = vmatmul.mubr.bf16.gmra.mrb[0].mxu0 %v1377
        %v1476 = vpop.f32.mrb[0].mxu0
        %v1477 = vadd.f32 %v1356, %v1476
        %v1478 = vpop.f32.mrb[0].mxu0
        %v1479 = vadd.f32 %v1356, %v1478
        %v1480 = vpop.f32.mrb[0].mxu0
        %v1481 = vadd.f32 %v1361, %v1480
        %v1482 = vpop.f32.mrb[0].mxu0
        %v1483 = vadd.f32 %v1361, %v1482
        %1484 = vdwg.mxu0
        %v1485 = vmul.f32 %v896, %v1414
        %v1486 = vmul.f32 %v898, %v1416
        %v1487 = vmul.f32 %v1009, %v1467
        %v1488 = vmul.f32 %v1011, %v1469
        %v1489 = vmul.f32 %v900, %v1418
        %v1490 = vmul.f32 %v902, %v1420
        %v1491 = vmul.f32 %v1013, %v1471
        %v1492 = vmul.f32 %v1015, %v1473
        %v1493 = vmul.f32 %v906, %v1424
        %v1494 = vmul.f32 %v908, %v1426
        %v1495 = vmul.f32 %v1019, %v1477
        %v1496 = vmul.f32 %v1021, %v1479
        %v1497 = vmul.f32 %v910, %v1428
        %v1498 = vmul.f32 %v912, %v1430
        %v1499 = vmul.f32 %v1023, %v1481
        %v1500 = vmul.f32 %v1025, %v1483
        %v1501 = vadd.f32 %v1485, %v1309
        %v1502 = vadd.f32 %v1486, %v1310
        %v1503 = vadd.f32 %v1487, %v1311
        %v1504 = vadd.f32 %v1488, %v1312
        %v1505 = vadd.f32 %v1489, %v1313
        %v1506 = vadd.f32 %v1490, %v1314
        %v1507 = vadd.f32 %v1491, %v1315
        %v1508 = vadd.f32 %v1492, %v1316
        %v1509 = vadd.f32 %v1493, %v1317
        %v1510 = vadd.f32 %v1494, %v1318
        %v1511 = vadd.f32 %v1495, %v1319
        %v1512 = vadd.f32 %v1496, %v1320
        %v1513 = vadd.f32 %v1497, %v1321
        %v1514 = vadd.f32 %v1498, %v1322
        %v1515 = vadd.f32 %v1499, %v1323
        %v1516 = vadd.f32 %v1500, %v1324
        %v1517 = vld [vmem:[%s5] sm:$0xf]
        %v1518 = vld [vmem:[%s5 + $0x4] sm:$0xf]
        %v1519 = vld [vmem:[%s5 + $0x8] sm:$0xf]
        %v1520 = vld [vmem:[%s5 + $0xc] sm:$0xf]
        %v1521 = vpack.c.bf16 %v1107, %v1103
        %v1522 = vpack.c.bf16 %v1108, %v1104
        %v1523 = vpack.c.bf16 %v1109, %v1105
        %v1524 = vpack.c.bf16 %v1110, %v1106
        %v1525 = vpack.c.bf16 %v1115, %v1111
        %v1526 = vpack.c.bf16 %v1116, %v1112
        %v1527 = vpack.c.bf16 %v1117, %v1113
        %v1528 = vpack.c.bf16 %v1118, %v1114
        %v1529 = vpack.c.bf16 %v1123, %v1119
        %v1530 = vpack.c.bf16 %v1124, %v1120
        %v1531 = vpack.c.bf16 %v1125, %v1121
        %v1532 = vpack.c.bf16 %v1126, %v1122
        %v1533 = vpack.c.bf16 %v1131, %v1127
        %v1534 = vpack.c.bf16 %v1132, %v1128
        %v1535 = vpack.c.bf16 %v1133, %v1129
        %v1536 = vpack.c.bf16 %v1134, %v1130
        %v1537 = vld [vmem:[%s6] sm:$0xff]
        %v1538 = vld [vmem:[%s6 + $0x8] sm:$0xff]
        %v1539 = vld [vmem:[%s6 + $0x10] sm:$0xff]
        %v1540 = vld [vmem:[%s6 + $0x18] sm:$0xff]
        %1542 = vset.pattern.permute.xlu0 0
        %1543 = vperm.xlu0 %1542, %v1537
        %v1544 = vpop.permute.xlu0 %1543
        %1547 = vset.pattern.permute.xlu0 0
        %1548 = vperm.xlu0 %1547, %v1538
        %v1549 = vpop.permute.xlu0 %1548
        %1552 = vset.pattern.permute.xlu0 0
        %1553 = vperm.xlu0 %1552, %v1539
        %v1554 = vpop.permute.xlu0 %1553
        %1557 = vset.pattern.permute.xlu0 0
        %1558 = vperm.xlu0 %1557, %v1540
        %v1559 = vpop.permute.xlu0 %1558
        %v1565 = vunpack.c.l.b16 %v1517
        %v1566 = vunpack.c.l.b16 %v1518
        %v1567 = vunpack.c.l.b16 %v1519
        %v1568 = vunpack.c.l.b16 %v1520
        %v1569 = vpack.c.b16 %v1566, %v1565
        %v1570 = vpack.c.b16 %v1568, %v1567
        %vm1571 = vcmask 523264
        %v1573 = vsel %vm1571, %v1569, 0
        %v1576 = vsel %vm1571, %v1570, 0
        %1578 = vmatprep.subr.bf16.mxu0 %v1522
        %1579 = vmatpush1.bf16.msra.mxu0 %v1521
        %1580 = vmatprep.subr.bf16.mxu0 %v1526
        %1581 = vmatpush1.bf16.msra.mxu0 %v1525
        %1582 = vmatprep.subr.bf16.mxu0 %v1530
        %1583 = vmatpush1.bf16.msra.mxu0 %v1529
        %1584 = vmatprep.subr.bf16.mxu0 %v1534
        %1585 = vmatpush1.bf16.msra.mxu0 %v1533
        %1586 = vmatprep.subr.bf16.mxu0 0
        %1587 = vmatpush1.bf16.msra.mxu0 0
        %1588 = vmatprep.subr.bf16.mxu0 0
        %1589 = vmatpush1.bf16.msra.mxu0 0
        %1590 = vmatprep.subr.bf16.mxu0 0
        %1591 = vmatpush1.bf16.msra.mxu0 0
        %1592 = vmatprep.subr.bf16.mxu0 0
        %1593 = vmatpush1.bf16.msra.mxu0 0
        %1594 = vmatprep.subr.bf16.mxu0 0
        %1595 = vmatpush1.bf16.msra.mxu0 0
        %1596 = vmatprep.subr.bf16.mxu0 0
        %1597 = vmatpush1.bf16.msra.mxu0 0
        %1598 = vmatprep.subr.bf16.mxu0 0
        %1599 = vmatpush1.bf16.msra.mxu0 0
        %1600 = vmatprep.subr.bf16.mxu0 0
        %1601 = vmatpush1.bf16.msra.mxu0 0
        %1602 = vmatprep.subr.bf16.mxu0 0
        %1603 = vmatpush1.bf16.msra.mxu0 0
        %1604 = vmatprep.subr.bf16.mxu0 0
        %1605 = vmatpush1.bf16.msra.mxu0 0
        %1606 = vmatprep.subr.bf16.mxu0 0
        %1607 = vmatpush1.bf16.msra.mxu0 0
        %1608 = vmatprep.subr.bf16.mxu0 0
        %1609 = vmatpush1.bf16.msra.mxu0 0
        %1610 = vmatprep.mubr.bf16.mxu0 0
        %1611 = vmatmul.mubr.bf16.gmra.mrb[0].mxu0 %v1573
        %v1612 = vpop.f32.mrb[0].mxu0
        %v1613 = vadd.f32 %v1544, %v1612
        %v1614 = vpop.f32.mrb[0].mxu0
        %v1615 = vadd.f32 %v1544, %v1614
        %v1616 = vpop.f32.mrb[0].mxu0
        %v1617 = vadd.f32 %v1549, %v1616
        %v1618 = vpop.f32.mrb[0].mxu0
        %v1619 = vadd.f32 %v1549, %v1618
        %1620 = vmatprep.mubr.bf16.mxu0 0
        %1621 = vmatmul.mubr.bf16.gmra.mrb[0].mxu0 %v1576
        %v1622 = vpop.f32.mrb[0].mxu0
        %v1623 = vadd.f32 %v1554, %v1622
        %v1624 = vpop.f32.mrb[0].mxu0
        %v1625 = vadd.f32 %v1554, %v1624
        %v1626 = vpop.f32.mrb[0].mxu0
        %v1627 = vadd.f32 %v1559, %v1626
        %v1628 = vpop.f32.mrb[0].mxu0
        %v1629 = vadd.f32 %v1559, %v1628
        %1630 = vdwg.mxu0
        %1631 = vmatprep.subr.bf16.mxu0 %v1524
        %1632 = vmatpush1.bf16.msra.mxu0 %v1523
        %1633 = vmatprep.subr.bf16.mxu0 %v1528
        %1634 = vmatpush1.bf16.msra.mxu0 %v1527
        %1635 = vmatprep.subr.bf16.mxu0 %v1532
        %1636 = vmatpush1.bf16.msra.mxu0 %v1531
        %1637 = vmatprep.subr.bf16.mxu0 %v1536
        %1638 = vmatpush1.bf16.msra.mxu0 %v1535
        %1639 = vmatprep.subr.bf16.mxu0 0
        %1640 = vmatpush1.bf16.msra.mxu0 0
        %1641 = vmatprep.subr.bf16.mxu0 0
        %1642 = vmatpush1.bf16.msra.mxu0 0
        %1643 = vmatprep.subr.bf16.mxu0 0
        %1644 = vmatpush1.bf16.msra.mxu0 0
        %1645 = vmatprep.subr.bf16.mxu0 0
        %1646 = vmatpush1.bf16.msra.mxu0 0
        %1647 = vmatprep.subr.bf16.mxu0 0
        %1648 = vmatpush1.bf16.msra.mxu0 0
        %1649 = vmatprep.subr.bf16.mxu0 0
        %1650 = vmatpush1.bf16.msra.mxu0 0
        %1651 = vmatprep.subr.bf16.mxu0 0
        %1652 = vmatpush1.bf16.msra.mxu0 0
        %1653 = vmatprep.subr.bf16.mxu0 0
        %1654 = vmatpush1.bf16.msra.mxu0 0
        %1655 = vmatprep.subr.bf16.mxu0 0
        %1656 = vmatpush1.bf16.msra.mxu0 0
        %1657 = vmatprep.subr.bf16.mxu0 0
        %1658 = vmatpush1.bf16.msra.mxu0 0
        %1659 = vmatprep.subr.bf16.mxu0 0
        %1660 = vmatpush1.bf16.msra.mxu0 0
        %1661 = vmatprep.subr.bf16.mxu0 0
        %1662 = vmatpush1.bf16.msra.mxu0 0
        %1663 = vmatprep.mubr.bf16.mxu0 0
        %1664 = vmatmul.mubr.bf16.gmra.mrb[0].mxu0 %v1573
        %v1665 = vpop.f32.mrb[0].mxu0
        %v1666 = vadd.f32 %v1544, %v1665
        %v1667 = vpop.f32.mrb[0].mxu0
        %v1668 = vadd.f32 %v1544, %v1667
        %v1669 = vpop.f32.mrb[0].mxu0
        %v1670 = vadd.f32 %v1549, %v1669
        %v1671 = vpop.f32.mrb[0].mxu0
        %v1672 = vadd.f32 %v1549, %v1671
        %1673 = vmatprep.mubr.bf16.mxu0 0
        %1674 = vmatmul.mubr.bf16.gmra.mrb[0].mxu0 %v1576
        %v1675 = vpop.f32.mrb[0].mxu0
        %v1676 = vadd.f32 %v1554, %v1675
        %v1677 = vpop.f32.mrb[0].mxu0
        %v1678 = vadd.f32 %v1554, %v1677
        %v1679 = vpop.f32.mrb[0].mxu0
        %v1680 = vadd.f32 %v1559, %v1679
        %v1681 = vpop.f32.mrb[0].mxu0
        %v1682 = vadd.f32 %v1559, %v1681
        %1683 = vdwg.mxu0
        %v1684 = vmax.f32 %v1613, 0.0
        %v1685 = vmax.f32 %v1615, 0.0
        %v1686 = vmax.f32 %v1666, 0.0
        %v1687 = vmax.f32 %v1668, 0.0
        %v1688 = vmax.f32 %v1617, 0.0
        %v1689 = vmax.f32 %v1619, 0.0
        %v1690 = vmax.f32 %v1670, 0.0
        %v1691 = vmax.f32 %v1672, 0.0
        %v1692 = vmax.f32 %v1623, 0.0
        %v1693 = vmax.f32 %v1625, 0.0
        %v1694 = vmax.f32 %v1676, 0.0
        %v1695 = vmax.f32 %v1678, 0.0
        %v1696 = vmax.f32 %v1627, 0.0
        %v1697 = vmax.f32 %v1629, 0.0
        %v1698 = vmax.f32 %v1680, 0.0
        %v1699 = vmax.f32 %v1682, 0.0
        %v1700 = vld [vmem:[%s7] sm:$0xff]
        %v1701 = vld [vmem:[%s7 + $0x8] sm:$0xff]
        %v1702 = vld [vmem:[%s7 + $0x10] sm:$0xff]
        %v1703 = vld [vmem:[%s7 + $0x18] sm:$0xff]
        %1705 = vset.pattern.permute.xlu0 0
        %1706 = vperm.xlu0 %1705, %v1700
        %v1707 = vpop.permute.xlu0 %1706
        %1710 = vset.pattern.permute.xlu0 0
        %1711 = vperm.xlu0 %1710, %v1701
        %v1712 = vpop.permute.xlu0 %1711
        %1715 = vset.pattern.permute.xlu0 0
        %1716 = vperm.xlu0 %1715, %v1702
        %v1717 = vpop.permute.xlu0 %1716
        %1720 = vset.pattern.permute.xlu0 0
        %1721 = vperm.xlu0 %1720, %v1703
        %v1722 = vpop.permute.xlu0 %1721
        %v1724 = vmul.f32 %v1501, %v1707
        %v1725 = vmul.f32 %v1502, %v1707
        %v1726 = vmul.f32 %v1503, %v1707
        %v1727 = vmul.f32 %v1504, %v1707
        %v1728 = vmul.f32 %v1505, %v1712
        %v1729 = vmul.f32 %v1506, %v1712
        %v1730 = vmul.f32 %v1507, %v1712
        %v1731 = vmul.f32 %v1508, %v1712
        %v1732 = vmul.f32 %v1509, %v1717
        %v1733 = vmul.f32 %v1510, %v1717
        %v1734 = vmul.f32 %v1511, %v1717
        %v1735 = vmul.f32 %v1512, %v1717
        %v1736 = vmul.f32 %v1513, %v1722
        %v1737 = vmul.f32 %v1514, %v1722
        %v1738 = vmul.f32 %v1515, %v1722
        %v1739 = vmul.f32 %v1516, %v1722
        %v1740 = vadd.f32 %v1724, %v1728
        %v1741 = vadd.f32 %v1740, %v1732
        %v1742 = vadd.f32 %v1741, %v1736
        %v1743 = vrot.slane %v1742, 4
        %v1744 = vadd.f32 %v1742, %v1743
        %v1745 = vrot.slane %v1744, 2
        %v1746 = vadd.f32 %v1744, %v1745
        %v1747 = vrot.slane %v1746, 1
        %v1748 = vadd.f32 %v1746, %v1747
        %v1749 = vadd.f32 %v1725, %v1729
        %v1750 = vadd.f32 %v1749, %v1733
        %v1751 = vadd.f32 %v1750, %v1737
        %v1752 = vrot.slane %v1751, 4
        %v1753 = vadd.f32 %v1751, %v1752
        %v1754 = vrot.slane %v1753, 2
        %v1755 = vadd.f32 %v1753, %v1754
        %v1756 = vrot.slane %v1755, 1
        %v1757 = vadd.f32 %v1755, %v1756
        %v1758 = vadd.f32 %v1726, %v1730
        %v1759 = vadd.f32 %v1758, %v1734
        %v1760 = vadd.f32 %v1759, %v1738
        %v1761 = vrot.slane %v1760, 4
        %v1762 = vadd.f32 %v1760, %v1761
        %v1763 = vrot.slane %v1762, 2
        %v1764 = vadd.f32 %v1762, %v1763
        %v1765 = vrot.slane %v1764, 1
        %v1766 = vadd.f32 %v1764, %v1765
        %v1767 = vadd.f32 %v1727, %v1731
        %v1768 = vadd.f32 %v1767, %v1735
        %v1769 = vadd.f32 %v1768, %v1739
        %v1770 = vrot.slane %v1769, 4
        %v1771 = vadd.f32 %v1769, %v1770
        %v1772 = vrot.slane %v1771, 2
        %v1773 = vadd.f32 %v1771, %v1772
        %v1774 = vrot.slane %v1773, 1
        %v1775 = vadd.f32 %v1773, %v1774
        %v1776 = vld [vmem:[%s8] sm:$0xff]
        %v1777 = vld [vmem:[%s8 + $0x8] sm:$0xff]
        %v1778 = vld [vmem:[%s8 + $0x10] sm:$0xff]
        %v1779 = vld [vmem:[%s8 + $0x18] sm:$0xff]
        %1781 = vset.pattern.permute.xlu0 0
        %1782 = vperm.xlu0 %1781, %v1776
        %v1783 = vpop.permute.xlu0 %1782
        %1786 = vset.pattern.permute.xlu0 0
        %1787 = vperm.xlu0 %1786, %v1777
        %v1788 = vpop.permute.xlu0 %1787
        %1791 = vset.pattern.permute.xlu0 0
        %1792 = vperm.xlu0 %1791, %v1778
        %v1793 = vpop.permute.xlu0 %1792
        %1796 = vset.pattern.permute.xlu0 0
        %1797 = vperm.xlu0 %1796, %v1779
        %v1798 = vpop.permute.xlu0 %1797
        %v1800 = vmul.f32 %v1684, %v1783
        %v1801 = vmul.f32 %v1685, %v1783
        %v1802 = vmul.f32 %v1686, %v1783
        %v1803 = vmul.f32 %v1687, %v1783
        %v1804 = vmul.f32 %v1688, %v1788
        %v1805 = vmul.f32 %v1689, %v1788
        %v1806 = vmul.f32 %v1690, %v1788
        %v1807 = vmul.f32 %v1691, %v1788
        %v1808 = vmul.f32 %v1692, %v1793
        %v1809 = vmul.f32 %v1693, %v1793
        %v1810 = vmul.f32 %v1694, %v1793
        %v1811 = vmul.f32 %v1695, %v1793
        %v1812 = vmul.f32 %v1696, %v1798
        %v1813 = vmul.f32 %v1697, %v1798
        %v1814 = vmul.f32 %v1698, %v1798
        %v1815 = vmul.f32 %v1699, %v1798
        %v1816 = vadd.f32 %v1800, %v1804
        %v1817 = vadd.f32 %v1816, %v1808
        %v1818 = vadd.f32 %v1817, %v1812
        %v1819 = vrot.slane %v1818, 4
        %v1820 = vadd.f32 %v1818, %v1819
        %v1821 = vrot.slane %v1820, 2
        %v1822 = vadd.f32 %v1820, %v1821
        %v1823 = vrot.slane %v1822, 1
        %v1824 = vadd.f32 %v1822, %v1823
        %v1825 = vadd.f32 %v1801, %v1805
        %v1826 = vadd.f32 %v1825, %v1809
        %v1827 = vadd.f32 %v1826, %v1813
        %v1828 = vrot.slane %v1827, 4
        %v1829 = vadd.f32 %v1827, %v1828
        %v1830 = vrot.slane %v1829, 2
        %v1831 = vadd.f32 %v1829, %v1830
        %v1832 = vrot.slane %v1831, 1
        %v1833 = vadd.f32 %v1831, %v1832
        %v1834 = vadd.f32 %v1802, %v1806
        %v1835 = vadd.f32 %v1834, %v1810
        %v1836 = vadd.f32 %v1835, %v1814
        %v1837 = vrot.slane %v1836, 4
        %v1838 = vadd.f32 %v1836, %v1837
        %v1839 = vrot.slane %v1838, 2
        %v1840 = vadd.f32 %v1838, %v1839
        %v1841 = vrot.slane %v1840, 1
        %v1842 = vadd.f32 %v1840, %v1841
        %v1843 = vadd.f32 %v1803, %v1807
        %v1844 = vadd.f32 %v1843, %v1811
        %v1845 = vadd.f32 %v1844, %v1815
        %v1846 = vrot.slane %v1845, 4
        %v1847 = vadd.f32 %v1845, %v1846
        %v1848 = vrot.slane %v1847, 2
        %v1849 = vadd.f32 %v1847, %v1848
        %v1850 = vrot.slane %v1849, 1
        %v1851 = vadd.f32 %v1849, %v1850
        %v1852 = vadd.f32 %v1748, %v1824
        %v1853 = vadd.f32 %v1757, %v1833
        %v1854 = vadd.f32 %v1766, %v1842
        %v1855 = vadd.f32 %v1775, %v1851
        %v1856 = vld [vmem:[#allocation2] sm:$0x1]
        %1858 = vset.pattern.permute.xlu0 0
        %1859 = vperm.xlu0 %1858, %v1856
        %v1860 = vpop.permute.xlu0 %1859
        %v1862 = vlaneseq
        %v1863 = vshrl.u32 %v1862, 7
        %v1864 = vsub.s32 0, %v1863
        %v1865 = vrot.slane %v1860, %v1864
        %v1866 = vadd.f32 %v1852, %v1865
        %v1867 = vadd.f32 %v1853, %v1865
        %v1868 = vadd.f32 %v1854, %v1865
        %v1869 = vadd.f32 %v1855, %v1865
        %v1874 = vcombine.low %v1866, %v1867
        %v1875 = vcombine.low %v1868, %v1869
        %v1877 = vunpack.c.l.s4 1966171168
        %v1878 = vunpack.c.0.s8 %v1877
        %v1879 = vlaneseq
        %v1880 = vshrl.u32 %v1879, 7
        %v1881 = vsub.s32 %v1878, %v1880
        %v1882 = vrot.slane %v1874, %v1881
        %v1884 = vunpack.c.l.s4 1966171168
        %v1885 = vunpack.c.0.s8 %v1884
        %v1886 = vlaneseq
        %v1887 = vshrl.u32 %v1886, 7
        %v1888 = vsub.s32 %v1885, %v1887
        %v1889 = vrot.slane %v1875, %v1888
        %v1890 = vcombine.low %v1882, %v1889
        %v1892 = vunpack.c.l.s4 1966171168
        %v1893 = vunpack.c.0.s8 %v1892
        %v1894 = vlaneseq
        %v1895 = vshrl.u32 %v1894, 7
        %v1896 = vsub.s32 %v1893, %v1895
        %v1897 = vrot.slane %v1890, %v1896
        %v1899 = vlaneseq
        %vm1900 = vcmp.ge.s32.totalorder %v1899, 0
        %vm1901 = vcmp.lt.s32.totalorder %v1899, 512
        %vm1902 = vmand %vm1900, %vm1901
        %1903 = vst.msk [vmem:[%s355] sm:$0xf] %vm1902, %v1897
        %s1904 = sand.u32 %s249, 1
        %s1905 = scalar_lea.sflag [#allocation4], %s1904
        %s1906 = sand.u32 %s249, 1
        %s1907 = smul.addr %s1906, 4
        %s1908 = scalar_lea.vmem [#allocation3], %s1907
        // Predicated region
        $region61: #{dcnv2_forward.1} parent=59 // pred_check
          %p1909 = pneg %p259
        $region62: #{dcnv2_forward.1} parent=59 // pred_check_branch
          %1911 = sbr.rel (%p1909) target = $region64
        $region63: #{dcnv2_forward.1} parent=59 // pred_region
          %s1912 = smul.u32 4, %s26
          %s1914 = ssub.s32 64, 64
          %1915 = vsyncadd %s1905, %s1914
          %s1916 = smul.addr %s1912, 16
          %s1917 = scalar_lea.hbm %s10, %s1916
          %s1919 = sshll.u32 %s1908, 4
          %s1920 = int_to_ptr.vmem [resolvable:$true] %s1919
          %1922 = dma.vmem_to_hbm [thread:$0]  %s1920, 64, %s1917, %s1905
        $region64: #{dcnv2_forward.1} parent=59 // pred_fallthru
          _
      $region60: #{dcnv2_forward.1} parent=5 // pred_fallthru
        _
      %p1923 = scmp.le.s32.totalorder 2, %s21
      // Predicated region
      $region65: #{dcnv2_forward.1} parent=5 // pred_check
        %p1924 = pneg %p1923
      $region66: #{dcnv2_forward.1} parent=5 // pred_check_branch
        %1926 = sbr.rel (%p1924) target = $region68
      $region67: #{dcnv2_forward.1} parent=5 // pred_region
        %s1927 = ssub.s32 %s21, 2
        // Predicated region
        $region69: #{dcnv2_forward.1} parent=67 // pred_check
          %p1928 = pneg %p265
        $region70: #{dcnv2_forward.1} parent=67 // pred_check_branch
          %1930 = sbr.rel (%p1928) target = $region72
        $region71: #{dcnv2_forward.1} parent=67 // pred_region
          %s1931 = sand.u32 %s250, 1
          %s1932 = scalar_lea.sflag [#allocation4], %s1931
          %s1933 = sand.u32 %s250, 1
          %s1934 = smul.addr %s1933, 4
          %s1935 = scalar_lea.vmem [#allocation3], %s1934
          %1936 = dma.done %s1932, 64
        $region72: #{dcnv2_forward.1} parent=67 // pred_fallthru
          _
      $region68: #{dcnv2_forward.1} parent=5 // pred_fallthru
        _
    $region6: #{dcnv2_forward.1} parent=1 // loop_footer
      %s25 = sadd.s32 1, %s21
    $region7: #{dcnv2_forward.1} parent=1 // loop_footer_branch
      %20 = sbr.rel target = $region3
    $region8: #{dcnv2_forward.1} parent=1 // loop_exit
      _
    %1937 = vsyncpa [#allocation4], 1
    %s1938 = scalar_lea.sflag [#allocation4], 1
    %1939 = vsyncpa %s1938, 1

</llo_original>
